<compile_context>
chip_gen: v7x
topology: tpu7x:2x2x1
jax: 0.10.0
libtpu: 0.0.40
codegen_flags: <defaults>
</compile_context>

<pallas_src>
import math
import functools

import jax
import jax.numpy as jnp
from jax import lax
from jax.experimental import pallas as pl
from jax.experimental.pallas import tpu as pltpu


# ----------------------------------------------------------------------------
# Fused MHA kernel: one grid step == one batch element, all heads.
# ----------------------------------------------------------------------------
def _mha_kernel(lengths_ref,                       # SMEM (B,)  int32  (scalar prefetch)
                q_in_ref, k_in_ref, v_in_ref,      # VMEM (1, S, M) f32
                wqkv_ref, bqkv_ref,                # VMEM (M, 3M) bf16, (1, 3M) f32
                wo_ref, bo_ref,                    # VMEM (M, M) bf16,  (1, M) f32
                o_ref,                             # VMEM (1, S, M) f32
                ctx_scratch,                       # VMEM (S, M) f32 scratch
                *, num_heads, head_dim, scale):
    S = q_in_ref.shape[1]
    M = q_in_ref.shape[2]
    H, D = num_heads, head_dim
    b = pl.program_id(0)

    f32 = jnp.float32
    bf16 = jnp.bfloat16

    # --- fused QKV projection: bf16 MXU matmuls, f32 accumulation --------------
    def project(x_ref, col):
        x = x_ref[0].astype(bf16)                                  # (S, M)
        w = wqkv_ref[:, col:col + M]                               # (M, M) bf16
        y = jnp.dot(x, w, preferred_element_type=f32)              # (S, M) f32
        return y + bqkv_ref[:, col:col + M]                        # bias broadcast over S

    q_all = project(q_in_ref, 0)          # (S, M)
    k_all = project(k_in_ref, M)
    v_all = project(v_in_ref, 2 * M)

    # --- key-padding mask rebuilt in-kernel from per-batch lengths -------------
    # key position j is valid iff j < lengths[b]
    valid = lax.broadcasted_iota(jnp.int32, (1, S), 1) < lengths_ref[b]   # (1, S) bool
    neg = f32(-1e30)   # finite fill: fully-masked rows -> uniform weights, never NaN

    # --- per-head attention; head split/merge via static lane slices -----------
    for h in range(H):
        lo = h * D
        qh = q_all[:, lo:lo + D].astype(bf16)      # (S, D)
        kh = k_all[:, lo:lo + D].astype(bf16)
        vh = v_all[:, lo:lo + D].astype(bf16)

        # q @ k^T without materializing a transpose: contract last dims of both.
        s = lax.dot_general(qh, kh, (((1,), (1,)), ((), ())),
                            preferred_element_type=f32) * scale    # (S, S) f32
        s = jnp.where(valid, s, neg)

        m = jnp.max(s, axis=-1, keepdims=True)
        p = jnp.exp(s - m)
        l = jnp.sum(p, axis=-1, keepdims=True)
        attn = p * pl.reciprocal(l, approx=True)                   # EUP vrcp, ~free

        ctx_h = jnp.dot(attn.astype(bf16), vh,
                        preferred_element_type=f32)                # (S, D) f32
        ctx_scratch[:, lo:lo + D] = ctx_h                          # merge heads lane-wise

    # --- fused output projection; lane-dense (S, M) store ----------------------
    ctx = ctx_scratch[...].astype(bf16)                            # (S, M)
    out = jnp.dot(ctx, wo_ref[...], preferred_element_type=f32) + bo_ref[...]
    o_ref[0] = out.astype(o_ref.dtype)


def mha_forward(query, key, value, key_lengths,
                w_qkv_bf16, b_qkv, wo_bf16, bo_row, num_heads):
    B, S, M = query.shape
    D = M // num_heads
    kernel = functools.partial(_mha_kernel, num_heads=num_heads, head_dim=D,
                               scale=1.0 / math.sqrt(D))

    grid_spec = pltpu.PrefetchScalarGridSpec(
        num_scalar_prefetch=1,                      # key_lengths -> SMEM
        grid=(B,),
        in_specs=[
            pl.BlockSpec((1, S, M), lambda b, lens: (b, 0, 0)),      # query
            pl.BlockSpec((1, S, M), lambda b, lens: (b, 0, 0)),      # key
            pl.BlockSpec((1, S, M), lambda b, lens: (b, 0, 0)),      # value
            pl.BlockSpec((M, 3 * M), lambda b, lens: (0, 0)),        # W_qkv (resident)
            pl.BlockSpec((1, 3 * M), lambda b, lens: (0, 0)),        # b_qkv (resident)
            pl.BlockSpec((M, M), lambda b, lens: (0, 0)),            # W_o   (resident)
            pl.BlockSpec((1, M), lambda b, lens: (0, 0)),            # b_o   (resident)
        ],
        out_specs=pl.BlockSpec((1, S, M), lambda b, lens: (b, 0, 0)),
        scratch_shapes=[pltpu.VMEM((S, M), jnp.float32)],
    )

    return pl.pallas_call(
        kernel,
        out_shape=jax.ShapeDtypeStruct((B, S, M), jnp.float32),
        grid_spec=grid_spec,
        compiler_params=pltpu.CompilerParams(
            dimension_semantics=("parallel",),
            vmem_limit_bytes=32 * 1024 * 1024,   # above default scoped limit
        ),
    )(key_lengths, query, key, value, w_qkv_bf16, b_qkv, wo_bf16, bo_row)


# ----------------------------------------------------------------------------
# Module wrapper (parameter setup only; all compute lives in the kernel)
# ----------------------------------------------------------------------------
class MultiHeadedAttentionPallas:
    def __init__(self, model_dimension, num_heads, param_key):
        assert model_dimension % num_heads == 0
        self.model_dimension = model_dimension
        self.num_heads = num_heads
        self.head_dimension = model_dimension // num_heads

        bound = 1.0 / math.sqrt(model_dimension)   # PyTorch nn.Linear default init
        keys = jax.random.split(param_key, 8)

        def init_linear(kw, kb):
            w = jax.random.uniform(kw, (model_dimension, model_dimension),
                                   jnp.float32, -bound, bound)
            b = jax.random.uniform(kb, (model_dimension,),
                                   jnp.float32, -bound, bound)
            return w, b

        self.wq, self.bq = init_linear(keys[0], keys[1])
        self.wk, self.bk = init_linear(keys[2], keys[3])
        self.wv, self.bv = init_linear(keys[4], keys[5])
        self.wo, self.bo = init_linear(keys[6], keys[7])

        # Packed / pre-cast copies consumed by the kernel (cast once, not per call).
        self.w_qkv_bf16 = jnp.concatenate(
            [self.wq, self.wk, self.wv], axis=1).astype(jnp.bfloat16)      # (M, 3M)
        self.b_qkv = jnp.concatenate(
            [self.bq, self.bk, self.bv]).reshape(1, -1)                    # (1, 3M) f32
        self.wo_bf16 = self.wo.astype(jnp.bfloat16)                        # (M, M)
        self.bo_row = self.bo.reshape(1, -1)                               # (1, M) f32

    def __call__(self, query, key, value, key_lengths=None):
        """key_lengths: (B,) int32 number of valid key positions per batch
        (key-padding mask); None means attend to everything."""
        B, S, M = query.shape
        if key_lengths is None:
            key_lengths = jnp.full((B,), S, dtype=jnp.int32)
        return mha_forward(query, key, value, key_lengths.astype(jnp.int32),
                           self.w_qkv_bf16, self.b_qkv,
                           self.wo_bf16, self.bo_row, self.num_heads)


# ----------------------------------------------------------------------------
# Pure-JAX (f32) reference for a correctness check
# ----------------------------------------------------------------------------
def reference_forward(mha, query, key, value, key_lengths):
    B, S, M = query.shape
    H, D = mha.num_heads, mha.head_dimension

    def lin(x, w, b):
        return x @ w + b

    def split(x):
        return x.reshape(B, S, H, D).transpose(0, 2, 1, 3)

    q = split(lin(query, mha.wq, mha.bq))
    k = split(lin(key, mha.wk, mha.bk))
    v = split(lin(value, mha.wv, mha.bv))

    mask = (jnp.arange(S)[None, :] < key_lengths[:, None])[:, None, None, :]  # (B,1,1,S)
    scores = jnp.einsum("bhqd,bhkd->bhqk", q, k) / math.sqrt(D)
    scores = jnp.where(mask, scores, -jnp.inf)
    attn = jax.nn.softmax(scores, axis=-1)
    ctx = jnp.einsum("bhqk,bhkd->bhqd", attn, v)
    ctx = ctx.transpose(0, 2, 1, 3).reshape(B, S, M)
    return lin(ctx, mha.wo, mha.bo)


if __name__ == "__main__":
    B, S, M, H = 2, 8, 32, 4

    mha = MultiHeadedAttentionPallas(M, H, jax.random.PRNGKey(42))

    key0 = jax.random.PRNGKey(0)
    kq, kk, kv = jax.random.split(key0, 3)
    query = jax.random.normal(kq, (B, S, M), jnp.float32)
    key_in = jax.random.normal(kk, (B, S, M), jnp.float32)
    value = jax.random.normal(kv, (B, S, M), jnp.float32)

    # padding mask: batch 0 attends to the first 6 key positions, batch 1 to all 8.
    lengths = jnp.array([6, 8], dtype=jnp.int32)

    out = mha(query, key_in, value, lengths)
    out = jax.block_until_ready(out)

    ref = reference_forward(mha, query, key_in, value, lengths)
    assert out.shape == (B, S, M)
    # bf16 matmuls + approx reciprocal vs. pure-f32 reference -> loosened tolerance.
    assert jnp.allclose(out, ref, atol=5e-2, rtol=5e-2), "mismatch vs reference"

    print("KERNEL_OK")
</pallas_src>

<mosaic_0001>
module attributes {stable_mosaic.version = 11 : i64} {
  func.func @_mha_kernel(%arg0: i32, %arg1: memref<2xi32, #tpu.memory_space<smem>>, %arg2: memref<1x8x32xf32, #tpu.memory_space<vmem>>, %arg3: memref<1x8x32xf32, #tpu.memory_space<vmem>>, %arg4: memref<1x8x32xf32, #tpu.memory_space<vmem>>, %arg5: memref<32x96xbf16, #tpu.memory_space<vmem>>, %arg6: memref<1x96xf32, #tpu.memory_space<vmem>>, %arg7: memref<32x32xbf16, #tpu.memory_space<vmem>>, %arg8: memref<1x32xf32, #tpu.memory_space<vmem>>, %arg9: memref<1x8x32xf32, #tpu.memory_space<vmem>>, %arg10: memref<8x32xf32, #tpu.memory_space<vmem>>) attributes {dimension_semantics = [#tpu.dimension_semantics<parallel>], iteration_bounds = array<i64: 2>, scalar_prefetch = 1 : i64, scratch_operands = 1 : i64, tpu.core_type = #tpu.core_type<tc>, window_params = [{transform_indices = @transform_0, window_bounds = array<i64: 1, 8, 32>}, {transform_indices = @transform_1, window_bounds = array<i64: 1, 8, 32>}, {transform_indices = @transform_2, window_bounds = array<i64: 1, 8, 32>}, {pipeline_mode = #tpu.pipeline_mode<synchronous>, transform_indices = @transform_3, window_bounds = array<i64: 32, 96>}, {pipeline_mode = #tpu.pipeline_mode<synchronous>, transform_indices = @transform_4, window_bounds = array<i64: 1, 96>}, {pipeline_mode = #tpu.pipeline_mode<synchronous>, transform_indices = @transform_5, window_bounds = array<i64: 32, 32>}, {pipeline_mode = #tpu.pipeline_mode<synchronous>, transform_indices = @transform_6, window_bounds = array<i64: 1, 32>}, {transform_indices = @transform_7, window_bounds = array<i64: 1, 8, 32>}]} {
    %c0 = arith.constant 0 : index
    %c0_0 = arith.constant 0 : index
    %c0_1 = arith.constant 0 : index
    %0 = vector.load %arg2[%c0, %c0_0, %c0_1] : memref<1x8x32xf32, #tpu.memory_space<vmem>>, vector<1x8x32xf32>
    %1 = vector.shape_cast %0 : vector<1x8x32xf32> to vector<8x32xf32>
    %2 = arith.truncf %1 : vector<8x32xf32> to vector<8x32xbf16>
    %c0_2 = arith.constant 0 : index
    %c0_3 = arith.constant 0 : index
    %3 = vector.load %arg5[%c0_2, %c0_3] : memref<32x96xbf16, #tpu.memory_space<vmem>>, vector<32x32xbf16>
    %cst = arith.constant dense<0.000000e+00> : vector<8x32xf32>
    %4 = tpu.matmul %2, %3, %cst {dimension_numbers = #tpu.dot_dimension_numbers<[1], [0], [0], [1], [0, 0, 1, 1], [], []>} : vector<8x32xbf16>, vector<32x32xbf16>, vector<8x32xf32> -> vector<8x32xf32>
    %c0_4 = arith.constant 0 : index
    %c0_5 = arith.constant 0 : index
    %5 = vector.load %arg6[%c0_4, %c0_5] : memref<1x96xf32, #tpu.memory_space<vmem>>, vector<1x32xf32>
    %6 = vector.broadcast %5 : vector<1x32xf32> to vector<8x32xf32>
    %7 = arith.addf %4, %6 : vector<8x32xf32>
    %c0_6 = arith.constant 0 : index
    %c0_7 = arith.constant 0 : index
    %c0_8 = arith.constant 0 : index
    %8 = vector.load %arg3[%c0_6, %c0_7, %c0_8] : memref<1x8x32xf32, #tpu.memory_space<vmem>>, vector<1x8x32xf32>
    %9 = vector.shape_cast %8 : vector<1x8x32xf32> to vector<8x32xf32>
    %10 = arith.truncf %9 : vector<8x32xf32> to vector<8x32xbf16>
    %c0_9 = arith.constant 0 : index
    %c32 = arith.constant 32 : index
    %11 = vector.load %arg5[%c0_9, %c32] : memref<32x96xbf16, #tpu.memory_space<vmem>>, vector<32x32xbf16>
    %cst_10 = arith.constant dense<0.000000e+00> : vector<8x32xf32>
    %12 = tpu.matmul %10, %11, %cst_10 {dimension_numbers = #tpu.dot_dimension_numbers<[1], [0], [0], [1], [0, 0, 1, 1], [], []>} : vector<8x32xbf16>, vector<32x32xbf16>, vector<8x32xf32> -> vector<8x32xf32>
    %c0_11 = arith.constant 0 : index
    %c32_12 = arith.constant 32 : index
    %13 = vector.load %arg6[%c0_11, %c32_12] : memref<1x96xf32, #tpu.memory_space<vmem>>, vector<1x32xf32>
    %14 = vector.broadcast %13 : vector<1x32xf32> to vector<8x32xf32>
    %15 = arith.addf %12, %14 : vector<8x32xf32>
    %c0_13 = arith.constant 0 : index
    %c0_14 = arith.constant 0 : index
    %c0_15 = arith.constant 0 : index
    %16 = vector.load %arg4[%c0_13, %c0_14, %c0_15] : memref<1x8x32xf32, #tpu.memory_space<vmem>>, vector<1x8x32xf32>
    %17 = vector.shape_cast %16 : vector<1x8x32xf32> to vector<8x32xf32>
    %18 = arith.truncf %17 : vector<8x32xf32> to vector<8x32xbf16>
    %c0_16 = arith.constant 0 : index
    %c64 = arith.constant 64 : index
    %19 = vector.load %arg5[%c0_16, %c64] : memref<32x96xbf16, #tpu.memory_space<vmem>>, vector<32x32xbf16>
    %cst_17 = arith.constant dense<0.000000e+00> : vector<8x32xf32>
    %20 = tpu.matmul %18, %19, %cst_17 {dimension_numbers = #tpu.dot_dimension_numbers<[1], [0], [0], [1], [0, 0, 1, 1], [], []>} : vector<8x32xbf16>, vector<32x32xbf16>, vector<8x32xf32> -> vector<8x32xf32>
    %c0_18 = arith.constant 0 : index
    %c64_19 = arith.constant 64 : index
    %21 = vector.load %arg6[%c0_18, %c64_19] : memref<1x96xf32, #tpu.memory_space<vmem>>, vector<1x32xf32>
    %22 = vector.broadcast %21 : vector<1x32xf32> to vector<8x32xf32>
    %23 = arith.addf %20, %22 : vector<8x32xf32>
    %24 = tpu.iota {dimensions = array<i32: 1>} : vector<1x8xi32>
    %25 = arith.index_cast %arg0 : i32 to index
    %26 = memref.load %arg1[%25] : memref<2xi32, #tpu.memory_space<smem>>
    %27 = vector.broadcast %26 : i32 to vector<1x8xi32>
    %28 = arith.cmpi slt, %24, %27 : vector<1x8xi32>
    %29 = vector.extract_strided_slice %7 {offsets = [0, 0], sizes = [8, 8], strides = [1, 1]} : vector<8x32xf32> to vector<8x8xf32>
    %30 = arith.truncf %29 : vector<8x8xf32> to vector<8x8xbf16>
    %31 = vector.extract_strided_slice %15 {offsets = [0, 0], sizes = [8, 8], strides = [1, 1]} : vector<8x32xf32> to vector<8x8xf32>
    %32 = arith.truncf %31 : vector<8x8xf32> to vector<8x8xbf16>
    %33 = vector.extract_strided_slice %23 {offsets = [0, 0], sizes = [8, 8], strides = [1, 1]} : vector<8x32xf32> to vector<8x8xf32>
    %34 = arith.truncf %33 : vector<8x8xf32> to vector<8x8xbf16>
    %cst_20 = arith.constant dense<0.000000e+00> : vector<8x8xf32>
    %35 = tpu.matmul %30, %32, %cst_20 {dimension_numbers = #tpu.dot_dimension_numbers<[1], [1], [0], [0], [0, 0, 1, 0], [], []>} : vector<8x8xbf16>, vector<8x8xbf16>, vector<8x8xf32> -> vector<8x8xf32>
    %cst_21 = arith.constant 0.353553385 : f32
    %36 = vector.broadcast %cst_21 : f32 to vector<8x8xf32>
    %37 = arith.mulf %35, %36 : vector<8x8xf32>
    %cst_22 = arith.constant -1.000000e+30 : f32
    %38 = vector.shape_cast %28 : vector<1x8xi1> to vector<1x8xi1>
    %39 = vector.broadcast %38 : vector<1x8xi1> to vector<8x8xi1>
    %40 = vector.broadcast %cst_22 : f32 to vector<8x8xf32>
    %41 = arith.select %39, %37, %40 : vector<8x8xi1>, vector<8x8xf32>
    %cst_23 = arith.constant dense<0xFF800000> : vector<8xf32>
    %42 = vector.multi_reduction <maximumf>, %41, %cst_23 [1] : vector<8x8xf32> to vector<8xf32>
    %43 = vector.shape_cast %42 : vector<8xf32> to vector<8x1xf32>
    %44 = vector.broadcast %43 : vector<8x1xf32> to vector<8x8xf32>
    %45 = arith.subf %41, %44 : vector<8x8xf32>
    %46 = math.exp %45 : vector<8x8xf32>
    %cst_24 = arith.constant dense<0.000000e+00> : vector<8xf32>
    %47 = vector.multi_reduction <add>, %46, %cst_24 [1] : vector<8x8xf32> to vector<8xf32>
    %48 = vector.shape_cast %47 : vector<8xf32> to vector<8x1xf32>
    %49 = tpu.reciprocal %48 {approx = true} : vector<8x1xf32> -> vector<8x1xf32>
    %50 = vector.broadcast %49 : vector<8x1xf32> to vector<8x8xf32>
    %51 = arith.mulf %46, %50 : vector<8x8xf32>
    %52 = arith.truncf %51 : vector<8x8xf32> to vector<8x8xbf16>
    %cst_25 = arith.constant dense<0.000000e+00> : vector<8x8xf32>
    %53 = tpu.matmul %52, %34, %cst_25 {dimension_numbers = #tpu.dot_dimension_numbers<[1], [0], [0], [1], [0, 0, 1, 1], [], []>} : vector<8x8xbf16>, vector<8x8xbf16>, vector<8x8xf32> -> vector<8x8xf32>
    %c0_26 = arith.constant 0 : index
    %c0_27 = arith.constant 0 : index
    %54 = vector.load %arg10[%c0_26, %c0_27] : memref<8x32xf32, #tpu.memory_space<vmem>>, vector<8x8xf32>
    tpu.vector_store %arg10[%c0_26, %c0_27], %53 {strides = array<i32>} : memref<8x32xf32, #tpu.memory_space<vmem>>, vector<8x8xf32>,
    %55 = vector.extract_strided_slice %7 {offsets = [0, 8], sizes = [8, 8], strides = [1, 1]} : vector<8x32xf32> to vector<8x8xf32>
    %56 = arith.truncf %55 : vector<8x8xf32> to vector<8x8xbf16>
    %57 = vector.extract_strided_slice %15 {offsets = [0, 8], sizes = [8, 8], strides = [1, 1]} : vector<8x32xf32> to vector<8x8xf32>
    %58 = arith.truncf %57 : vector<8x8xf32> to vector<8x8xbf16>
    %59 = vector.extract_strided_slice %23 {offsets = [0, 8], sizes = [8, 8], strides = [1, 1]} : vector<8x32xf32> to vector<8x8xf32>
    %60 = arith.truncf %59 : vector<8x8xf32> to vector<8x8xbf16>
    %cst_28 = arith.constant dense<0.000000e+00> : vector<8x8xf32>
    %61 = tpu.matmul %56, %58, %cst_28 {dimension_numbers = #tpu.dot_dimension_numbers<[1], [1], [0], [0], [0, 0, 1, 0], [], []>} : vector<8x8xbf16>, vector<8x8xbf16>, vector<8x8xf32> -> vector<8x8xf32>
    %cst_29 = arith.constant 0.353553385 : f32
    %62 = vector.broadcast %cst_29 : f32 to vector<8x8xf32>
    %63 = arith.mulf %61, %62 : vector<8x8xf32>
    %cst_30 = arith.constant -1.000000e+30 : f32
    %64 = vector.shape_cast %28 : vector<1x8xi1> to vector<1x8xi1>
    %65 = vector.broadcast %64 : vector<1x8xi1> to vector<8x8xi1>
    %66 = vector.broadcast %cst_30 : f32 to vector<8x8xf32>
    %67 = arith.select %65, %63, %66 : vector<8x8xi1>, vector<8x8xf32>
    %cst_31 = arith.constant dense<0xFF800000> : vector<8xf32>
    %68 = vector.multi_reduction <maximumf>, %67, %cst_31 [1] : vector<8x8xf32> to vector<8xf32>
    %69 = vector.shape_cast %68 : vector<8xf32> to vector<8x1xf32>
    %70 = vector.broadcast %69 : vector<8x1xf32> to vector<8x8xf32>
    %71 = arith.subf %67, %70 : vector<8x8xf32>
    %72 = math.exp %71 : vector<8x8xf32>
    %cst_32 = arith.constant dense<0.000000e+00> : vector<8xf32>
    %73 = vector.multi_reduction <add>, %72, %cst_32 [1] : vector<8x8xf32> to vector<8xf32>
    %74 = vector.shape_cast %73 : vector<8xf32> to vector<8x1xf32>
    %75 = tpu.reciprocal %74 {approx = true} : vector<8x1xf32> -> vector<8x1xf32>
    %76 = vector.broadcast %75 : vector<8x1xf32> to vector<8x8xf32>
    %77 = arith.mulf %72, %76 : vector<8x8xf32>
    %78 = arith.truncf %77 : vector<8x8xf32> to vector<8x8xbf16>
    %cst_33 = arith.constant dense<0.000000e+00> : vector<8x8xf32>
    %79 = tpu.matmul %78, %60, %cst_33 {dimension_numbers = #tpu.dot_dimension_numbers<[1], [0], [0], [1], [0, 0, 1, 1], [], []>} : vector<8x8xbf16>, vector<8x8xbf16>, vector<8x8xf32> -> vector<8x8xf32>
    %c0_34 = arith.constant 0 : index
    %c8 = arith.constant 8 : index
    %80 = vector.load %arg10[%c0_34, %c8] : memref<8x32xf32, #tpu.memory_space<vmem>>, vector<8x8xf32>
    tpu.vector_store %arg10[%c0_34, %c8], %79 {strides = array<i32>} : memref<8x32xf32, #tpu.memory_space<vmem>>, vector<8x8xf32>,
    %81 = vector.extract_strided_slice %7 {offsets = [0, 16], sizes = [8, 8], strides = [1, 1]} : vector<8x32xf32> to vector<8x8xf32>
    %82 = arith.truncf %81 : vector<8x8xf32> to vector<8x8xbf16>
    %83 = vector.extract_strided_slice %15 {offsets = [0, 16], sizes = [8, 8], strides = [1, 1]} : vector<8x32xf32> to vector<8x8xf32>
    %84 = arith.truncf %83 : vector<8x8xf32> to vector<8x8xbf16>
    %85 = vector.extract_strided_slice %23 {offsets = [0, 16], sizes = [8, 8], strides = [1, 1]} : vector<8x32xf32> to vector<8x8xf32>
    %86 = arith.truncf %85 : vector<8x8xf32> to vector<8x8xbf16>
    %cst_35 = arith.constant dense<0.000000e+00> : vector<8x8xf32>
    %87 = tpu.matmul %82, %84, %cst_35 {dimension_numbers = #tpu.dot_dimension_numbers<[1], [1], [0], [0], [0, 0, 1, 0], [], []>} : vector<8x8xbf16>, vector<8x8xbf16>, vector<8x8xf32> -> vector<8x8xf32>
    %cst_36 = arith.constant 0.353553385 : f32
    %88 = vector.broadcast %cst_36 : f32 to vector<8x8xf32>
    %89 = arith.mulf %87, %88 : vector<8x8xf32>
    %cst_37 = arith.constant -1.000000e+30 : f32
    %90 = vector.shape_cast %28 : vector<1x8xi1> to vector<1x8xi1>
    %91 = vector.broadcast %90 : vector<1x8xi1> to vector<8x8xi1>
    %92 = vector.broadcast %cst_37 : f32 to vector<8x8xf32>
    %93 = arith.select %91, %89, %92 : vector<8x8xi1>, vector<8x8xf32>
    %cst_38 = arith.constant dense<0xFF800000> : vector<8xf32>
    %94 = vector.multi_reduction <maximumf>, %93, %cst_38 [1] : vector<8x8xf32> to vector<8xf32>
    %95 = vector.shape_cast %94 : vector<8xf32> to vector<8x1xf32>
    %96 = vector.broadcast %95 : vector<8x1xf32> to vector<8x8xf32>
    %97 = arith.subf %93, %96 : vector<8x8xf32>
    %98 = math.exp %97 : vector<8x8xf32>
    %cst_39 = arith.constant dense<0.000000e+00> : vector<8xf32>
    %99 = vector.multi_reduction <add>, %98, %cst_39 [1] : vector<8x8xf32> to vector<8xf32>
    %100 = vector.shape_cast %99 : vector<8xf32> to vector<8x1xf32>
    %101 = tpu.reciprocal %100 {approx = true} : vector<8x1xf32> -> vector<8x1xf32>
    %102 = vector.broadcast %101 : vector<8x1xf32> to vector<8x8xf32>
    %103 = arith.mulf %98, %102 : vector<8x8xf32>
    %104 = arith.truncf %103 : vector<8x8xf32> to vector<8x8xbf16>
    %cst_40 = arith.constant dense<0.000000e+00> : vector<8x8xf32>
    %105 = tpu.matmul %104, %86, %cst_40 {dimension_numbers = #tpu.dot_dimension_numbers<[1], [0], [0], [1], [0, 0, 1, 1], [], []>} : vector<8x8xbf16>, vector<8x8xbf16>, vector<8x8xf32> -> vector<8x8xf32>
    %c0_41 = arith.constant 0 : index
    %c16 = arith.constant 16 : index
    %106 = vector.load %arg10[%c0_41, %c16] : memref<8x32xf32, #tpu.memory_space<vmem>>, vector<8x8xf32>
    tpu.vector_store %arg10[%c0_41, %c16], %105 {strides = array<i32>} : memref<8x32xf32, #tpu.memory_space<vmem>>, vector<8x8xf32>,
    %107 = vector.extract_strided_slice %7 {offsets = [0, 24], sizes = [8, 8], strides = [1, 1]} : vector<8x32xf32> to vector<8x8xf32>
    %108 = arith.truncf %107 : vector<8x8xf32> to vector<8x8xbf16>
    %109 = vector.extract_strided_slice %15 {offsets = [0, 24], sizes = [8, 8], strides = [1, 1]} : vector<8x32xf32> to vector<8x8xf32>
    %110 = arith.truncf %109 : vector<8x8xf32> to vector<8x8xbf16>
    %111 = vector.extract_strided_slice %23 {offsets = [0, 24], sizes = [8, 8], strides = [1, 1]} : vector<8x32xf32> to vector<8x8xf32>
    %112 = arith.truncf %111 : vector<8x8xf32> to vector<8x8xbf16>
    %cst_42 = arith.constant dense<0.000000e+00> : vector<8x8xf32>
    %113 = tpu.matmul %108, %110, %cst_42 {dimension_numbers = #tpu.dot_dimension_numbers<[1], [1], [0], [0], [0, 0, 1, 0], [], []>} : vector<8x8xbf16>, vector<8x8xbf16>, vector<8x8xf32> -> vector<8x8xf32>
    %cst_43 = arith.constant 0.353553385 : f32
    %114 = vector.broadcast %cst_43 : f32 to vector<8x8xf32>
    %115 = arith.mulf %113, %114 : vector<8x8xf32>
    %cst_44 = arith.constant -1.000000e+30 : f32
    %116 = vector.shape_cast %28 : vector<1x8xi1> to vector<1x8xi1>
    %117 = vector.broadcast %116 : vector<1x8xi1> to vector<8x8xi1>
    %118 = vector.broadcast %cst_44 : f32 to vector<8x8xf32>
    %119 = arith.select %117, %115, %118 : vector<8x8xi1>, vector<8x8xf32>
    %cst_45 = arith.constant dense<0xFF800000> : vector<8xf32>
    %120 = vector.multi_reduction <maximumf>, %119, %cst_45 [1] : vector<8x8xf32> to vector<8xf32>
    %121 = vector.shape_cast %120 : vector<8xf32> to vector<8x1xf32>
    %122 = vector.broadcast %121 : vector<8x1xf32> to vector<8x8xf32>
    %123 = arith.subf %119, %122 : vector<8x8xf32>
    %124 = math.exp %123 : vector<8x8xf32>
    %cst_46 = arith.constant dense<0.000000e+00> : vector<8xf32>
    %125 = vector.multi_reduction <add>, %124, %cst_46 [1] : vector<8x8xf32> to vector<8xf32>
    %126 = vector.shape_cast %125 : vector<8xf32> to vector<8x1xf32>
    %127 = tpu.reciprocal %126 {approx = true} : vector<8x1xf32> -> vector<8x1xf32>
    %128 = vector.broadcast %127 : vector<8x1xf32> to vector<8x8xf32>
    %129 = arith.mulf %124, %128 : vector<8x8xf32>
    %130 = arith.truncf %129 : vector<8x8xf32> to vector<8x8xbf16>
    %cst_47 = arith.constant dense<0.000000e+00> : vector<8x8xf32>
    %131 = tpu.matmul %130, %112, %cst_47 {dimension_numbers = #tpu.dot_dimension_numbers<[1], [0], [0], [1], [0, 0, 1, 1], [], []>} : vector<8x8xbf16>, vector<8x8xbf16>, vector<8x8xf32> -> vector<8x8xf32>
    %c0_48 = arith.constant 0 : index
    %c24 = arith.constant 24 : index
    %132 = vector.load %arg10[%c0_48, %c24] : memref<8x32xf32, #tpu.memory_space<vmem>>, vector<8x8xf32>
    tpu.vector_store %arg10[%c0_48, %c24], %131 {strides = array<i32>} : memref<8x32xf32, #tpu.memory_space<vmem>>, vector<8x8xf32>,
    %c0_49 = arith.constant 0 : index
    %c0_50 = arith.constant 0 : index
    %133 = vector.load %arg10[%c0_49, %c0_50] : memref<8x32xf32, #tpu.memory_space<vmem>>, vector<8x32xf32>
    %134 = arith.truncf %133 : vector<8x32xf32> to vector<8x32xbf16>
    %c0_51 = arith.constant 0 : index
    %c0_52 = arith.constant 0 : index
    %135 = vector.load %arg7[%c0_51, %c0_52] : memref<32x32xbf16, #tpu.memory_space<vmem>>, vector<32x32xbf16>
    %cst_53 = arith.constant dense<0.000000e+00> : vector<8x32xf32>
    %136 = tpu.matmul %134, %135, %cst_53 {dimension_numbers = #tpu.dot_dimension_numbers<[1], [0], [0], [1], [0, 0, 1, 1], [], []>} : vector<8x32xbf16>, vector<32x32xbf16>, vector<8x32xf32> -> vector<8x32xf32>
    %c0_54 = arith.constant 0 : index
    %c0_55 = arith.constant 0 : index
    %137 = vector.load %arg8[%c0_54, %c0_55] : memref<1x32xf32, #tpu.memory_space<vmem>>, vector<1x32xf32>
    %138 = vector.broadcast %137 : vector<1x32xf32> to vector<8x32xf32>
    %139 = arith.addf %136, %138 : vector<8x32xf32>
    %c0_56 = arith.constant 0 : index
    %c0_57 = arith.constant 0 : index
    %c0_58 = arith.constant 0 : index
    %140 = vector.load %arg9[%c0_56, %c0_57, %c0_58] : memref<1x8x32xf32, #tpu.memory_space<vmem>>, vector<1x8x32xf32>
    %141 = vector.shape_cast %140 : vector<1x8x32xf32> to vector<8x32xf32>
    %142 = vector.shape_cast %139 : vector<8x32xf32> to vector<1x8x32xf32>
    tpu.vector_store %arg9[%c0_56, %c0_57, %c0_58], %142 {strides = array<i32>} : memref<1x8x32xf32, #tpu.memory_space<vmem>>, vector<1x8x32xf32>,
    return
  }
  func.func @transform_0(%arg0: i32, %arg1: memref<2xi32, #tpu.memory_space<smem>>) -> (i32, i32, i32) {
    %c0_i32 = arith.constant 0 : i32
    %c0_i32_0 = arith.constant 0 : i32
    %c0_i32_1 = arith.constant 0 : i32
    return %arg0, %c0_i32, %c0_i32_0 : i32, i32, i32
  }
  func.func @transform_1(%arg0: i32, %arg1: memref<2xi32, #tpu.memory_space<smem>>) -> (i32, i32, i32) {
    %c0_i32 = arith.constant 0 : i32
    %c0_i32_0 = arith.constant 0 : i32
    %c0_i32_1 = arith.constant 0 : i32
    return %arg0, %c0_i32, %c0_i32_0 : i32, i32, i32
  }
  func.func @transform_2(%arg0: i32, %arg1: memref<2xi32, #tpu.memory_space<smem>>) -> (i32, i32, i32) {
    %c0_i32 = arith.constant 0 : i32
    %c0_i32_0 = arith.constant 0 : i32
    %c0_i32_1 = arith.constant 0 : i32
    return %arg0, %c0_i32, %c0_i32_0 : i32, i32, i32
  }
  func.func @transform_3(%arg0: i32, %arg1: memref<2xi32, #tpu.memory_space<smem>>) -> (i32, i32) {
    %c0_i32 = arith.constant 0 : i32
    %c0_i32_0 = arith.constant 0 : i32
    %c0_i32_1 = arith.constant 0 : i32
    return %c0_i32, %c0_i32_0 : i32, i32
  }
  func.func @transform_4(%arg0: i32, %arg1: memref<2xi32, #tpu.memory_space<smem>>) -> (i32, i32) {
    %c0_i32 = arith.constant 0 : i32
    %c0_i32_0 = arith.constant 0 : i32
    %c0_i32_1 = arith.constant 0 : i32
    return %c0_i32, %c0_i32_0 : i32, i32
  }
  func.func @transform_5(%arg0: i32, %arg1: memref<2xi32, #tpu.memory_space<smem>>) -> (i32, i32) {
    %c0_i32 = arith.constant 0 : i32
    %c0_i32_0 = arith.constant 0 : i32
    %c0_i32_1 = arith.constant 0 : i32
    return %c0_i32, %c0_i32_0 : i32, i32
  }
  func.func @transform_6(%arg0: i32, %arg1: memref<2xi32, #tpu.memory_space<smem>>) -> (i32, i32) {
    %c0_i32 = arith.constant 0 : i32
    %c0_i32_0 = arith.constant 0 : i32
    %c0_i32_1 = arith.constant 0 : i32
    return %c0_i32, %c0_i32_0 : i32, i32
  }
  func.func @transform_7(%arg0: i32, %arg1: memref<2xi32, #tpu.memory_space<smem>>) -> (i32, i32, i32) {
    %c0_i32 = arith.constant 0 : i32
    %c0_i32_0 = arith.constant 0 : i32
    %c0_i32_1 = arith.constant 0 : i32
    return %arg0, %c0_i32, %c0_i32_0 : i32, i32, i32
  }
}

</mosaic_0001>

<llo_original>
// kernel: tpu_custom_call.1
$region0: #{tpu_custom_call.1}
  #allocation0 [shape = 'u32[]', space=smem, size = 0x4, offset = 0x4, fixed_abs, tag = 'smem constant byte address 0x4 - core index']
  #allocation1 [shape = 'u32[144,128]{1,0:T(1,128)}', space=vmem, size = 0x12000, scoped, tag = 'internal scratch']
  #allocation2 [shape = 'f32[8,32]{1,0:T(8,128)}', space=vmem, size = 0x1000, scoped, tag = 'scratch operand']
  #allocation3 [shape = 's32[1]{0}', space=sflag, size = 0x4, scoped, tag = 'scoped memory for tpu_custom_call.1']
  #allocation4 [shape = 'u8[512]{0}', space=smem, size = 0x200, scoped, tag = 'prefetched SMEM operand 0']
  %s0 = inlined_call_operand.hbm [shape: s32[2], index: 0, kind: input, shape index: {}]
  %s1 = inlined_call_operand.hbm [shape: f32[2,8,32], index: 1, kind: input, shape index: {}]
  %s2 = inlined_call_operand.hbm [shape: f32[2,8,32], index: 2, kind: input, shape index: {}]
  %s3 = inlined_call_operand.hbm [shape: f32[2,8,32], index: 3, kind: input, shape index: {}]
  %s4 = inlined_call_operand.hbm [shape: bf16[32,96], index: 4, kind: input, shape index: {}]
  %s5 = inlined_call_operand.vmem [shape: f32[1,96], index: 5, kind: input, shape index: {}]
  %s6 = inlined_call_operand.vmem [shape: bf16[32,32], index: 6, kind: input, shape index: {}]
  %s7 = inlined_call_operand.vmem [shape: f32[1,32], index: 7, kind: input, shape index: {}]
  %s8 = inlined_call_operand.hbm [shape: f32[2,8,32], index: 8, kind: output, shape index: {}]
  %s9 = sld [smem:[#allocation0]]
  $region77: #{tpu_custom_call.1} parent=0
    _
  %s11 = ssub.s32 1, %s9
  %s12 = scalar_select 0, %s11, %s9
  %14 = dma.hbm_to_smem %s0, 16, [#allocation4], [#allocation3]
  %15 = dma.done [#allocation3], 16
  %16 = sfence
  $region1: #{tpu_custom_call.1} parent=0
    #allocation5 [shape = 'u8[8192]{0}', space=vmem, size = 0x2000, scoped, tag = 'input window, operand 1']
    #allocation6 [shape = 's32[2]{0}', space=sflag, size = 0x8, scoped, tag = 'scoped memory for tpu_custom_call.1']
    #allocation7 [shape = 's32[2]{0}', space=sflag, size = 0x8, scoped, tag = 'scoped memory for tpu_custom_call.1']
    #allocation8 [shape = 'u8[8192]{0}', space=vmem, size = 0x2000, scoped, tag = 'input window, operand 2']
    #allocation9 [shape = 's32[2]{0}', space=sflag, size = 0x8, scoped, tag = 'scoped memory for tpu_custom_call.1']
    #allocation10 [shape = 'u8[8192]{0}', space=vmem, size = 0x2000, scoped, tag = 'input window, operand 3']
    #allocation11 [shape = 'u8[8192]{0}', space=vmem, size = 0x2000, scoped, tag = 'input window, operand 4, single buffered']
    #allocation12 [shape = 's32[1]{0}', space=sflag, size = 0x4, scoped, tag = 'scoped memory for tpu_custom_call.1']
    #allocation13 [shape = 'u8[8192]{0}', space=vmem, size = 0x2000, scoped, tag = 'output window, operand 0']
    %17 = vsyncpa [#allocation6], 0
    %s18 = scalar_lea.sflag [#allocation6], 1
    %19 = vsyncpa %s18, 0
    %20 = vsyncpa [#allocation9], 0
    %s21 = scalar_lea.sflag [#allocation9], 1
    %22 = vsyncpa %s21, 0
    %23 = vsyncpa [#allocation12], 0
    %24 = vsyncpa [#allocation7], 0
    %s25 = scalar_lea.sflag [#allocation7], 1
    %26 = vsyncpa %s25, 0
    loop: start=0, step=1, limit=4
    $region2: #{tpu_custom_call.1} parent=1 // loop_pre_header
      _
    $region3: #{tpu_custom_call.1} parent=1 // loop_header
      %s28 = sphi 0, %s32
      %p29 = scmp.ge.s32.totalorder %s28, 4
      %s38 = sphi 0, %s40
      %s41 = sphi 0, %s38
      %s42 = sphi 0, %s41
      %s58 = sphi 0, %s42
      %s64 = sphi 0, %s66
      %s67 = sphi 0, %s64
      %s68 = sphi 0, %s67
      %s84 = sphi 0, %s68
      %s90 = sphi 0, %s92
      %s93 = sphi 0, %s90
      %s94 = sphi 0, %s93
      %s110 = sphi 0, %s94
      %s114 = sphi 0, %s114
      %s116 = sphi 0, %s114
      %s117 = sphi 0, %s116
      %s131 = sphi 0, %s117
      %s135 = sphi 0, %s135
      %s137 = sphi 0, %s135
      %s138 = sphi 0, %s137
      %s152 = sphi 0, %s138
      %s156 = sphi 0, %s156
      %s158 = sphi 0, %s156
      %s159 = sphi 0, %s158
      %s173 = sphi 0, %s159
      %s177 = sphi 0, %s177
      %s179 = sphi 0, %s177
      %s180 = sphi 0, %s179
      %s194 = sphi 0, %s180
      %s200 = sphi 0, %s202
      %s203 = sphi 0, %s200
      %s204 = sphi 0, %s203
      %s220 = sphi 0, %s204
    $region4: #{tpu_custom_call.1} parent=1 // loop_header_branch
      %31 = sbr.rel (%p29) target = $region8
    $region5: #{tpu_custom_call.1} parent=1 // loop_body
      %s33 = ssub.s32 %s28, 1
      %s34 = ssub.s32 %s28, 2
      %s35 = sadd.s32 %s28, 1
      %s36 = ssub.s32 %s28, %s35
      %p37 = scmp.eq.s32.totalorder %s36, 0
      %s39 = sadd.s32 %s38, 1
      %s40 = scalar_select %p37, %s38, %s39
      %p43 = pneg %p37
      %p44 = scmp.eq.s32.totalorder %s28, 1
      %p45 = por %p43, %p44
      %p46 = scmp.ne.s32.totalorder %s38, %s41
      %p47 = scmp.eq.s32.totalorder %s28, 0
      %p48 = por %p46, %p47
      %p49 = scmp.ne.s32.totalorder %s38, %s41
      %p50 = scmp.eq.s32.totalorder %s33, 1
      %p51 = por %p49, %p50
      %p52 = scmp.ne.s32.totalorder %s41, %s42
      %p53 = scmp.eq.s32.totalorder %s33, 0
      %p54 = por %p52, %p53
      %p55 = scmp.ne.s32.totalorder %s41, %s42
      %p56 = scmp.eq.s32.totalorder %s34, 1
      %p57 = por %p55, %p56
      %p59 = scmp.ne.s32.totalorder %s42, %s58
      %p60 = scmp.eq.s32.totalorder %s34, 0
      %p61 = por %p59, %p60
      %s62 = ssub.s32 %s28, %s35
      %p63 = scmp.eq.s32.totalorder %s62, 0
      %s65 = sadd.s32 %s64, 1
      %s66 = scalar_select %p63, %s64, %s65
      %p69 = pneg %p63
      %p70 = scmp.eq.s32.totalorder %s28, 1
      %p71 = por %p69, %p70
      %p72 = scmp.ne.s32.totalorder %s64, %s67
      %p73 = scmp.eq.s32.totalorder %s28, 0
      %p74 = por %p72, %p73
      %p75 = scmp.ne.s32.totalorder %s64, %s67
      %p76 = scmp.eq.s32.totalorder %s33, 1
      %p77 = por %p75, %p76
      %p78 = scmp.ne.s32.totalorder %s67, %s68
      %p79 = scmp.eq.s32.totalorder %s33, 0
      %p80 = por %p78, %p79
      %p81 = scmp.ne.s32.totalorder %s67, %s68
      %p82 = scmp.eq.s32.totalorder %s34, 1
      %p83 = por %p81, %p82
      %p85 = scmp.ne.s32.totalorder %s68, %s84
      %p86 = scmp.eq.s32.totalorder %s34, 0
      %p87 = por %p85, %p86
      %s88 = ssub.s32 %s28, %s35
      %p89 = scmp.eq.s32.totalorder %s88, 0
      %s91 = sadd.s32 %s90, 1
      %s92 = scalar_select %p89, %s90, %s91
      %p95 = pneg %p89
      %p96 = scmp.eq.s32.totalorder %s28, 1
      %p97 = por %p95, %p96
      %p98 = scmp.ne.s32.totalorder %s90, %s93
      %p99 = scmp.eq.s32.totalorder %s28, 0
      %p100 = por %p98, %p99
      %p101 = scmp.ne.s32.totalorder %s90, %s93
      %p102 = scmp.eq.s32.totalorder %s33, 1
      %p103 = por %p101, %p102
      %p104 = scmp.ne.s32.totalorder %s93, %s94
      %p105 = scmp.eq.s32.totalorder %s33, 0
      %p106 = por %p104, %p105
      %p107 = scmp.ne.s32.totalorder %s93, %s94
      %p108 = scmp.eq.s32.totalorder %s34, 1
      %p109 = por %p107, %p108
      %p111 = scmp.ne.s32.totalorder %s94, %s110
      %p112 = scmp.eq.s32.totalorder %s34, 0
      %p113 = por %p111, %p112
      %s115 = sadd.s32 %s114, 1
      %p118 = scmp.eq.s32.totalorder %s28, 1
      %p119 = scmp.ne.s32.totalorder %s114, %s116
      %p120 = scmp.eq.s32.totalorder %s28, 0
      %p121 = por %p119, %p120
      %p122 = scmp.ne.s32.totalorder %s114, %s116
      %p123 = scmp.eq.s32.totalorder %s33, 1
      %p124 = por %p122, %p123
      %p125 = scmp.ne.s32.totalorder %s116, %s117
      %p126 = scmp.eq.s32.totalorder %s33, 0
      %p127 = por %p125, %p126
      %p128 = scmp.ne.s32.totalorder %s116, %s117
      %p129 = scmp.eq.s32.totalorder %s34, 1
      %p130 = por %p128, %p129
      %p132 = scmp.ne.s32.totalorder %s117, %s131
      %p133 = scmp.eq.s32.totalorder %s34, 0
      %p134 = por %p132, %p133
      %s136 = sadd.s32 %s135, 1
      %p139 = scmp.eq.s32.totalorder %s28, 1
      %p140 = scmp.ne.s32.totalorder %s135, %s137
      %p141 = scmp.eq.s32.totalorder %s28, 0
      %p142 = por %p140, %p141
      %p143 = scmp.ne.s32.totalorder %s135, %s137
      %p144 = scmp.eq.s32.totalorder %s33, 1
      %p145 = por %p143, %p144
      %p146 = scmp.ne.s32.totalorder %s137, %s138
      %p147 = scmp.eq.s32.totalorder %s33, 0
      %p148 = por %p146, %p147
      %p149 = scmp.ne.s32.totalorder %s137, %s138
      %p150 = scmp.eq.s32.totalorder %s34, 1
      %p151 = por %p149, %p150
      %p153 = scmp.ne.s32.totalorder %s138, %s152
      %p154 = scmp.eq.s32.totalorder %s34, 0
      %p155 = por %p153, %p154
      %s157 = sadd.s32 %s156, 1
      %p160 = scmp.eq.s32.totalorder %s28, 1
      %p161 = scmp.ne.s32.totalorder %s156, %s158
      %p162 = scmp.eq.s32.totalorder %s28, 0
      %p163 = por %p161, %p162
      %p164 = scmp.ne.s32.totalorder %s156, %s158
      %p165 = scmp.eq.s32.totalorder %s33, 1
      %p166 = por %p164, %p165
      %p167 = scmp.ne.s32.totalorder %s158, %s159
      %p168 = scmp.eq.s32.totalorder %s33, 0
      %p169 = por %p167, %p168
      %p170 = scmp.ne.s32.totalorder %s158, %s159
      %p171 = scmp.eq.s32.totalorder %s34, 1
      %p172 = por %p170, %p171
      %p174 = scmp.ne.s32.totalorder %s159, %s173
      %p175 = scmp.eq.s32.totalorder %s34, 0
      %p176 = por %p174, %p175
      %s178 = sadd.s32 %s177, 1
      %p181 = scmp.eq.s32.totalorder %s28, 1
      %p182 = scmp.ne.s32.totalorder %s177, %s179
      %p183 = scmp.eq.s32.totalorder %s28, 0
      %p184 = por %p182, %p183
      %p185 = scmp.ne.s32.totalorder %s177, %s179
      %p186 = scmp.eq.s32.totalorder %s33, 1
      %p187 = por %p185, %p186
      %p188 = scmp.ne.s32.totalorder %s179, %s180
      %p189 = scmp.eq.s32.totalorder %s33, 0
      %p190 = por %p188, %p189
      %p191 = scmp.ne.s32.totalorder %s179, %s180
      %p192 = scmp.eq.s32.totalorder %s34, 1
      %p193 = por %p191, %p192
      %p195 = scmp.ne.s32.totalorder %s180, %s194
      %p196 = scmp.eq.s32.totalorder %s34, 0
      %p197 = por %p195, %p196
      %s198 = ssub.s32 %s28, %s35
      %p199 = scmp.eq.s32.totalorder %s198, 0
      %s201 = sadd.s32 %s200, 1
      %s202 = scalar_select %p199, %s200, %s201
      %p205 = pneg %p199
      %p206 = scmp.eq.s32.totalorder %s28, 1
      %p207 = por %p205, %p206
      %p208 = scmp.ne.s32.totalorder %s200, %s203
      %p209 = scmp.eq.s32.totalorder %s28, 0
      %p210 = por %p208, %p209
      %p211 = scmp.ne.s32.totalorder %s200, %s203
      %p212 = scmp.eq.s32.totalorder %s33, 1
      %p213 = por %p211, %p212
      %p214 = scmp.ne.s32.totalorder %s203, %s204
      %p215 = scmp.eq.s32.totalorder %s33, 0
      %p216 = por %p214, %p215
      %p217 = scmp.ne.s32.totalorder %s203, %s204
      %p218 = scmp.eq.s32.totalorder %s34, 1
      %p219 = por %p217, %p218
      %p221 = scmp.ne.s32.totalorder %s204, %s220
      %p222 = scmp.eq.s32.totalorder %s34, 0
      %p223 = por %p221, %p222
      %p224 = scmp.le.s32.totalorder 1, %s28
      %p225 = scmp.lt.s32.totalorder %s28, 3
      %p226 = pnand %p224, %p225
      %p227 = pneg %p226
      // Predicated region
      $region9: #{tpu_custom_call.1} parent=5 // pred_check
        _
      $region10: #{tpu_custom_call.1} parent=5 // pred_check_branch
        %229 = sbr.rel (%p226) target = $region12
      $region11: #{tpu_custom_call.1} parent=5 // pred_region
        %s230 = ssub.s32 %s28, 1
        // Predicated region
        $region13: #{tpu_custom_call.1} parent=11 // pred_check
          %p231 = pneg %p127
        $region14: #{tpu_custom_call.1} parent=11 // pred_check_branch
          %233 = sbr.rel (%p231) target = $region16
        $region15: #{tpu_custom_call.1} parent=11 // pred_region
          %s235 = ssub.s32 256, 256
          %236 = vsyncadd [#allocation12], %s235
          %s237 = sshll.u32 [#allocation11], 4
          %s238 = int_to_ptr.vmem [resolvable:$true] %s237
          %243 = dma.hbm_to_vmem [thread:$0]  %s4, 256, %s238, [#allocation12], 64, 64, 4
        $region16: #{tpu_custom_call.1} parent=11 // pred_fallthru
          _
        // Predicated region
        $region17: #{tpu_custom_call.1} parent=11 // pred_check
          %p244 = pneg %p148
        $region18: #{tpu_custom_call.1} parent=11 // pred_check_branch
          %246 = sbr.rel (%p244) target = $region20
        $region19: #{tpu_custom_call.1} parent=11 // pred_region
          _
        $region20: #{tpu_custom_call.1} parent=11 // pred_fallthru
          _
        // Predicated region
        $region21: #{tpu_custom_call.1} parent=11 // pred_check
          %p247 = pneg %p169
        $region22: #{tpu_custom_call.1} parent=11 // pred_check_branch
          %249 = sbr.rel (%p247) target = $region24
        $region23: #{tpu_custom_call.1} parent=11 // pred_region
          _
        $region24: #{tpu_custom_call.1} parent=11 // pred_fallthru
          _
        // Predicated region
        $region25: #{tpu_custom_call.1} parent=11 // pred_check
          %p250 = pneg %p190
        $region26: #{tpu_custom_call.1} parent=11 // pred_check_branch
          %252 = sbr.rel (%p250) target = $region28
        $region27: #{tpu_custom_call.1} parent=11 // pred_region
          _
        $region28: #{tpu_custom_call.1} parent=11 // pred_fallthru
          _
      $region12: #{tpu_custom_call.1} parent=5 // pred_fallthru
        _
      %p253 = scmp.lt.s32.totalorder %s28, 2
      // Predicated region
      $region29: #{tpu_custom_call.1} parent=5 // pred_check
        %p254 = pneg %p253
      $region30: #{tpu_custom_call.1} parent=5 // pred_check_branch
        %256 = sbr.rel (%p254) target = $region32
      $region31: #{tpu_custom_call.1} parent=5 // pred_region
        // Predicated region
        $region33: #{tpu_custom_call.1} parent=31 // pred_check
          %p257 = pneg %p48
        $region34: #{tpu_custom_call.1} parent=31 // pred_check_branch
          %259 = sbr.rel (%p257) target = $region36
        $region35: #{tpu_custom_call.1} parent=31 // pred_region
          %s260 = sand.u32 %s38, 1
          %s261 = scalar_lea.sflag [#allocation6], %s260
          %s262 = sand.u32 %s38, 1
          %s263 = smul.addr %s262, 8
          %s264 = scalar_lea.vmem [#allocation5], %s263
          %s266 = ssub.s32 128, 128
          %267 = vsyncadd %s261, %s266
          %s268 = smul.addr %s28, 128
          %s269 = scalar_lea.hbm %s1, %s268
          %s271 = sshll.u32 %s264, 4
          %s272 = int_to_ptr.vmem [resolvable:$true] %s271
          %274 = dma.hbm_to_vmem [thread:$0]  %s269, 128, %s272, %s261
        $region36: #{tpu_custom_call.1} parent=31 // pred_fallthru
          _
        // Predicated region
        $region37: #{tpu_custom_call.1} parent=31 // pred_check
          %p275 = pneg %p74
        $region38: #{tpu_custom_call.1} parent=31 // pred_check_branch
          %277 = sbr.rel (%p275) target = $region40
        $region39: #{tpu_custom_call.1} parent=31 // pred_region
          %s278 = sand.u32 %s28, 1
          %s279 = scalar_lea.sflag [#allocation9], %s278
          %s280 = sand.u32 %s64, 1
          %s281 = smul.addr %s280, 8
          %s282 = scalar_lea.vmem [#allocation8], %s281
          %s284 = ssub.s32 128, 128
          %285 = vsyncadd %s279, %s284
          %s286 = smul.addr %s28, 128
          %s287 = scalar_lea.hbm %s2, %s286
          %s289 = sshll.u32 %s282, 4
          %s290 = int_to_ptr.vmem [resolvable:$true] %s289
          %292 = dma.hbm_to_vmem [thread:$0]  %s287, 128, %s290, %s279
        $region40: #{tpu_custom_call.1} parent=31 // pred_fallthru
          _
        // Predicated region
        $region41: #{tpu_custom_call.1} parent=31 // pred_check
          %p293 = pneg %p100
        $region42: #{tpu_custom_call.1} parent=31 // pred_check_branch
          %295 = sbr.rel (%p293) target = $region44
        $region43: #{tpu_custom_call.1} parent=31 // pred_region
          %s296 = sand.u32 %s28, 1
          %s297 = scalar_lea.sflag [#allocation9], %s296
          %s298 = sand.u32 %s90, 1
          %s299 = smul.addr %s298, 8
          %s300 = scalar_lea.vmem [#allocation10], %s299
          %s302 = ssub.s32 128, 128
          %303 = vsyncadd %s297, %s302
          %s304 = smul.addr %s28, 128
          %s305 = scalar_lea.hbm %s3, %s304
          %s307 = sshll.u32 %s300, 4
          %s308 = int_to_ptr.vmem [resolvable:$true] %s307
          %310 = dma.hbm_to_vmem [thread:$0]  %s305, 128, %s308, %s297
        $region44: #{tpu_custom_call.1} parent=31 // pred_fallthru
          _
      $region32: #{tpu_custom_call.1} parent=5 // pred_fallthru
        _
      %p311 = scmp.le.s32.totalorder 1, %s28
      %p312 = scmp.lt.s32.totalorder %s28, 3
      %p313 = pnand %p311, %p312
      %p314 = pneg %p313
      // Predicated region
      $region45: #{tpu_custom_call.1} parent=5 // pred_check
        _
      $region46: #{tpu_custom_call.1} parent=5 // pred_check_branch
        %316 = sbr.rel (%p313) target = $region48
      $region47: #{tpu_custom_call.1} parent=5 // pred_region
        %s317 = ssub.s32 %s28, 1
        %s318 = sand.u32 %s41, 1
        %s319 = scalar_lea.sflag [#allocation6], %s318
        %s320 = sand.u32 %s41, 1
        %s321 = smul.addr %s320, 8
        %s322 = scalar_lea.vmem [#allocation5], %s321
        // Predicated region
        $region49: #{tpu_custom_call.1} parent=47 // pred_check
          %p323 = pneg %p54
        $region50: #{tpu_custom_call.1} parent=47 // pred_check_branch
          %325 = sbr.rel (%p323) target = $region52
        $region51: #{tpu_custom_call.1} parent=47 // pred_region
          %326 = dma.done %s319, 128
        $region52: #{tpu_custom_call.1} parent=47 // pred_fallthru
          _
        %s327 = sand.u32 %s33, 1
        %s328 = scalar_lea.sflag [#allocation9], %s327
        %s329 = sand.u32 %s67, 1
        %s330 = smul.addr %s329, 8
        %s331 = scalar_lea.vmem [#allocation8], %s330
        // Predicated region
        $region53: #{tpu_custom_call.1} parent=47 // pred_check
          %p332 = pneg %p80
        $region54: #{tpu_custom_call.1} parent=47 // pred_check_branch
          %334 = sbr.rel (%p332) target = $region56
        $region55: #{tpu_custom_call.1} parent=47 // pred_region
          %335 = dma.done %s328, 128
        $region56: #{tpu_custom_call.1} parent=47 // pred_fallthru
          _
        %s336 = sand.u32 %s33, 1
        %s337 = scalar_lea.sflag [#allocation9], %s336
        %s338 = sand.u32 %s93, 1
        %s339 = smul.addr %s338, 8
        %s340 = scalar_lea.vmem [#allocation10], %s339
        // Predicated region
        $region57: #{tpu_custom_call.1} parent=47 // pred_check
          %p341 = pneg %p106
        $region58: #{tpu_custom_call.1} parent=47 // pred_check_branch
          %343 = sbr.rel (%p341) target = $region60
        $region59: #{tpu_custom_call.1} parent=47 // pred_region
          %344 = dma.done %s337, 128
        $region60: #{tpu_custom_call.1} parent=47 // pred_fallthru
          _
        // Predicated region
        $region61: #{tpu_custom_call.1} parent=47 // pred_check
          %p345 = pneg %p127
        $region62: #{tpu_custom_call.1} parent=47 // pred_check_branch
          %347 = sbr.rel (%p345) target = $region64
        $region63: #{tpu_custom_call.1} parent=47 // pred_region
          %348 = dma.done [#allocation12], 256
        $region64: #{tpu_custom_call.1} parent=47 // pred_fallthru
          _
        %s349 = sand.u32 %s41, 1
        %s350 = scalar_lea.sflag [#allocation6], %s349
        %s351 = sand.u32 %s41, 1
        %s352 = smul.addr %s351, 8
        %s353 = scalar_lea.vmem [#allocation5], %s352
        %p354 = pneg %p54
        %p355 = pneg %p51
        %s356 = sand.u32 %s33, 1
        %s357 = scalar_lea.sflag [#allocation9], %s356
        %s358 = sand.u32 %s67, 1
        %s359 = smul.addr %s358, 8
        %s360 = scalar_lea.vmem [#allocation8], %s359
        %p361 = pneg %p80
        %p362 = pneg %p77
        %s363 = sand.u32 %s33, 1
        %s364 = scalar_lea.sflag [#allocation9], %s363
        %s365 = sand.u32 %s93, 1
        %s366 = smul.addr %s365, 8
        %s367 = scalar_lea.vmem [#allocation10], %s366
        %p368 = pneg %p106
        %p369 = pneg %p103
        %p370 = pneg %p127
        %p371 = pneg %p124
        %p372 = pneg %p148
        %p373 = pneg %p145
        %p374 = pneg %p169
        %p375 = pneg %p166
        %p376 = pneg %p190
        %p377 = pneg %p187
        %p378 = pneg %p216
        %p379 = pneg %p213
        %s380 = sand.u32 %s203, 1
        %s381 = scalar_lea.sflag [#allocation7], %s380
        %s382 = sand.u32 %s203, 1
        %s383 = smul.addr %s382, 8
        %s384 = scalar_lea.vmem [#allocation13], %s383
        %v386 = vld [vmem:[%s322] sm:$0xff]
        %v387 = vpack.c.bf16 %v386, %v386
        %v388 = vld [vmem:[#allocation11] sm:$0xf]
        %v389 = vld [vmem:[#allocation11 + $0x4] sm:$0xf]
        %v390 = vld [vmem:[#allocation11 + $0x8] sm:$0xf]
        %v391 = vld [vmem:[#allocation11 + $0xc] sm:$0xf]
        %v392 = vld [vmem:[%s5] sm:$0x1]
        %v394 = vlaneseq
        %v395 = vshrl.u32 %v394, 7
        %v396 = vsub.s32 0, %v395
        %v397 = vrot.slane %v392, %v396
        %v403 = vunpack.c.l.b16 %v388
        %v404 = vunpack.c.l.b16 %v389
        %v405 = vunpack.c.l.b16 %v390
        %v406 = vunpack.c.l.b16 %v391
        %v407 = vpack.c.b16 %v404, %v403
        %v408 = vpack.c.b16 %v406, %v405
        %vm411 = vcmask 261120
        %v413 = vsel %vm411, %v387, 0
        %415 = vmatprep.subr.bf16.mxu0 0
        %416 = vmatpush1.bf16.msra.mxu0 %v407
        %417 = vmatprep.subr.bf16.mxu0 0
        %418 = vmatpush1.bf16.msra.mxu0 %v408
        %419 = vmatprep.subr.bf16.mxu0 0
        %420 = vmatpush1.bf16.msra.mxu0 0
        %421 = vmatprep.subr.bf16.mxu0 0
        %422 = vmatpush1.bf16.msra.mxu0 0
        %423 = vmatprep.subr.bf16.mxu0 0
        %424 = vmatpush1.bf16.msra.mxu0 0
        %425 = vmatprep.subr.bf16.mxu0 0
        %426 = vmatpush1.bf16.msra.mxu0 0
        %427 = vmatprep.subr.bf16.mxu0 0
        %428 = vmatpush1.bf16.msra.mxu0 0
        %429 = vmatprep.subr.bf16.mxu0 0
        %430 = vmatpush1.bf16.msra.mxu0 0
        %431 = vmatprep.subr.bf16.mxu0 0
        %432 = vmatpush1.bf16.msra.mxu0 0
        %433 = vmatprep.subr.bf16.mxu0 0
        %434 = vmatpush1.bf16.msra.mxu0 0
        %435 = vmatprep.subr.bf16.mxu0 0
        %436 = vmatpush1.bf16.msra.mxu0 0
        %437 = vmatprep.subr.bf16.mxu0 0
        %438 = vmatpush1.bf16.msra.mxu0 0
        %439 = vmatprep.subr.bf16.mxu0 0
        %440 = vmatpush1.bf16.msra.mxu0 0
        %441 = vmatprep.subr.bf16.mxu0 0
        %442 = vmatpush1.bf16.msra.mxu0 0
        %443 = vmatprep.subr.bf16.mxu0 0
        %444 = vmatpush1.bf16.msra.mxu0 0
        %445 = vmatprep.subr.bf16.mxu0 0
        %446 = vmatpush1.bf16.msra.mxu0 0
        %447 = vmatprep.mubr.bf16.mxu0 0
        %448 = vmatmul.mubr.bf16.gmra.mrb[0].mxu0 %v413
        %v449 = vpop.f32.mrb[0].mxu0
        %v450 = vadd.f32 %v397, %v449
        %v451 = vpop.f32.mrb[0].mxu0
        %v452 = vpop.f32.mrb[0].mxu0
        %v453 = vpop.f32.mrb[0].mxu0
        %454 = vdwg.mxu0
        %v455 = vld [vmem:[%s331] sm:$0xff]
        %v456 = vpack.c.bf16 %v455, %v455
        %457 = vrot.lane.b32.xlu0 %v407, 96
        %v458 = vpop.permute.xlu0 %457
        %459 = vrot.lane.b32.xlu0 %v408, 96
        %v460 = vpop.permute.xlu0 %459
        %463 = vrot.lane.b32.xlu0 %v397, 96
        %v464 = vpop.permute.xlu0 %463
        %v467 = vsel %vm411, %v456, 0
        %469 = vmatprep.subr.bf16.mxu0 0
        %470 = vmatpush1.bf16.msra.mxu0 %v458
        %471 = vmatprep.subr.bf16.mxu0 0
        %472 = vmatpush1.bf16.msra.mxu0 %v460
        %473 = vmatprep.subr.bf16.mxu0 0
        %474 = vmatpush1.bf16.msra.mxu0 0
        %475 = vmatprep.subr.bf16.mxu0 0
        %476 = vmatpush1.bf16.msra.mxu0 0
        %477 = vmatprep.subr.bf16.mxu0 0
        %478 = vmatpush1.bf16.msra.mxu0 0
        %479 = vmatprep.subr.bf16.mxu0 0
        %480 = vmatpush1.bf16.msra.mxu0 0
        %481 = vmatprep.subr.bf16.mxu0 0
        %482 = vmatpush1.bf16.msra.mxu0 0
        %483 = vmatprep.subr.bf16.mxu0 0
        %484 = vmatpush1.bf16.msra.mxu0 0
        %485 = vmatprep.subr.bf16.mxu0 0
        %486 = vmatpush1.bf16.msra.mxu0 0
        %487 = vmatprep.subr.bf16.mxu0 0
        %488 = vmatpush1.bf16.msra.mxu0 0
        %489 = vmatprep.subr.bf16.mxu0 0
        %490 = vmatpush1.bf16.msra.mxu0 0
        %491 = vmatprep.subr.bf16.mxu0 0
        %492 = vmatpush1.bf16.msra.mxu0 0
        %493 = vmatprep.subr.bf16.mxu0 0
        %494 = vmatpush1.bf16.msra.mxu0 0
        %495 = vmatprep.subr.bf16.mxu0 0
        %496 = vmatpush1.bf16.msra.mxu0 0
        %497 = vmatprep.subr.bf16.mxu0 0
        %498 = vmatpush1.bf16.msra.mxu0 0
        %499 = vmatprep.subr.bf16.mxu0 0
        %500 = vmatpush1.bf16.msra.mxu0 0
        %501 = vmatprep.mubr.bf16.mxu0 0
        %502 = vmatmul.mubr.bf16.gmra.mrb[0].mxu0 %v467
        %v503 = vpop.f32.mrb[0].mxu0
        %v504 = vadd.f32 %v464, %v503
        %v505 = vpop.f32.mrb[0].mxu0
        %v506 = vpop.f32.mrb[0].mxu0
        %v507 = vpop.f32.mrb[0].mxu0
        %508 = vdwg.mxu0
        %v509 = vld [vmem:[%s340] sm:$0xff]
        %v510 = vpack.c.bf16 %v509, %v509
        %511 = vrot.lane.b32.xlu0 %v407, 64
        %v512 = vpop.permute.xlu0 %511
        %513 = vrot.lane.b32.xlu0 %v408, 64
        %v514 = vpop.permute.xlu0 %513
        %517 = vrot.lane.b32.xlu0 %v397, 64
        %v518 = vpop.permute.xlu0 %517
        %v521 = vsel %vm411, %v510, 0
        %523 = vmatprep.subr.bf16.mxu0 0
        %524 = vmatpush1.bf16.msra.mxu0 %v512
        %525 = vmatprep.subr.bf16.mxu0 0
        %526 = vmatpush1.bf16.msra.mxu0 %v514
        %527 = vmatprep.subr.bf16.mxu0 0
        %528 = vmatpush1.bf16.msra.mxu0 0
        %529 = vmatprep.subr.bf16.mxu0 0
        %530 = vmatpush1.bf16.msra.mxu0 0
        %531 = vmatprep.subr.bf16.mxu0 0
        %532 = vmatpush1.bf16.msra.mxu0 0
        %533 = vmatprep.subr.bf16.mxu0 0
        %534 = vmatpush1.bf16.msra.mxu0 0
        %535 = vmatprep.subr.bf16.mxu0 0
        %536 = vmatpush1.bf16.msra.mxu0 0
        %537 = vmatprep.subr.bf16.mxu0 0
        %538 = vmatpush1.bf16.msra.mxu0 0
        %539 = vmatprep.subr.bf16.mxu0 0
        %540 = vmatpush1.bf16.msra.mxu0 0
        %541 = vmatprep.subr.bf16.mxu0 0
        %542 = vmatpush1.bf16.msra.mxu0 0
        %543 = vmatprep.subr.bf16.mxu0 0
        %544 = vmatpush1.bf16.msra.mxu0 0
        %545 = vmatprep.subr.bf16.mxu0 0
        %546 = vmatpush1.bf16.msra.mxu0 0
        %547 = vmatprep.subr.bf16.mxu0 0
        %548 = vmatpush1.bf16.msra.mxu0 0
        %549 = vmatprep.subr.bf16.mxu0 0
        %550 = vmatpush1.bf16.msra.mxu0 0
        %551 = vmatprep.subr.bf16.mxu0 0
        %552 = vmatpush1.bf16.msra.mxu0 0
        %553 = vmatprep.subr.bf16.mxu0 0
        %554 = vmatpush1.bf16.msra.mxu0 0
        %555 = vmatprep.mubr.bf16.mxu0 0
        %556 = vmatmul.mubr.bf16.gmra.mrb[0].mxu0 %v521
        %v557 = vpop.f32.mrb[0].mxu0
        %v558 = vadd.f32 %v518, %v557
        %v559 = vpop.f32.mrb[0].mxu0
        %v560 = vpop.f32.mrb[0].mxu0
        %v561 = vpop.f32.mrb[0].mxu0
        %562 = vdwg.mxu0
        %v563 = vlaneseq
        %v564 = vand.u32 %v563, 127
        %s565 = sld [smem:[#allocation4 + %s33]]
        %v566 = vstv %s565
        %vm567 = vcmp.lt.s32.totalorder %v564, %v566
        %v568 = vpack.c.bf16 %v450, %v450
        %v569 = vpack.c.bf16 %v504, %v504
        %v570 = vpack.c.bf16 %v558, %v558
        %vm571 = vcmask 64512
        %v573 = vsel %vm571, %v568, 0
        %v576 = vsel %vm571, %v569, 0
        %578 = vmatprep.subr.bf16.mxu0 0
        %579 = vmatpush1.bf16.xpose.msra.mxu0 %v576
        %580 = vmatprep.subr.bf16.mxu0 0
        %581 = vmatpush1.bf16.xpose.msra.mxu0 0
        %582 = vmatprep.subr.bf16.mxu0 0
        %583 = vmatpush1.bf16.xpose.msra.mxu0 0
        %584 = vmatprep.subr.bf16.mxu0 0
        %585 = vmatpush1.bf16.xpose.msra.mxu0 0
        %586 = vmatprep.subr.bf16.mxu0 0
        %587 = vmatpush1.bf16.xpose.msra.mxu0 0
        %588 = vmatprep.subr.bf16.mxu0 0
        %589 = vmatpush1.bf16.xpose.msra.mxu0 0
        %590 = vmatprep.subr.bf16.mxu0 0
        %591 = vmatpush1.bf16.xpose.msra.mxu0 0
        %592 = vmatprep.subr.bf16.mxu0 0
        %593 = vmatpush1.bf16.xpose.msra.mxu0 0
        %594 = vmatprep.subr.bf16.mxu0 0
        %595 = vmatpush1.bf16.xpose.msra.mxu0 0
        %596 = vmatprep.subr.bf16.mxu0 0
        %597 = vmatpush1.bf16.xpose.msra.mxu0 0
        %598 = vmatprep.subr.bf16.mxu0 0
        %599 = vmatpush1.bf16.xpose.msra.mxu0 0
        %600 = vmatprep.subr.bf16.mxu0 0
        %601 = vmatpush1.bf16.xpose.msra.mxu0 0
        %602 = vmatprep.subr.bf16.mxu0 0
        %603 = vmatpush1.bf16.xpose.msra.mxu0 0
        %604 = vmatprep.subr.bf16.mxu0 0
        %605 = vmatpush1.bf16.xpose.msra.mxu0 0
        %606 = vmatprep.subr.bf16.mxu0 0
        %607 = vmatpush1.bf16.xpose.msra.mxu0 0
        %608 = vmatprep.subr.bf16.mxu0 0
        %609 = vmatpush1.bf16.xpose.msra.mxu0 0
        %610 = vmatprep.mubr.bf16.mxu0 0
        %611 = vmatmul.mubr.bf16.gmra.mrb[0].mxu0 %v573
        %v612 = vpop.f32.mrb[0].mxu0
        %v613 = vadd.f32 0.0, %v612
        %v614 = vpop.f32.mrb[0].mxu0
        %v615 = vpop.f32.mrb[0].mxu0
        %v616 = vpop.f32.mrb[0].mxu0
        %617 = vdwg.mxu0
        %v618 = vmul.f32 %v613, 0.35355338
        %v619 = vsel %vm567, 1, 0
        %vm620 = vcmp.eq.s32.totalorder %v619, 1
        %v621 = vsel %vm620, %v618, -1e+30
        %v622 = vsel %vm571, %v621, -inf
        %623 = vmax.xlane.f32.xlu0 %v622
        %v624 = vpop.xlane.xlu0 %623
        %v625 = vsub.f32 %v621, %v624
        %v626 = vmul.f32 %v625, 1.442695
        %v627 = vpow.pop %v626
        %v628 = vsel %vm571, %v627, 0.0
        %629 = vadd.xlane.f32.xlu0 %v628
        %v630 = vpop.xlane.xlu0 %629
        %v631 = vrcp.pop %v630
        %v632 = vmul.f32 %v627, %v631
        %v633 = vpack.c.bf16 %v632, %v632
        %v635 = vsel %vm571, %v633, 0
        %vm637 = vcmask 1043456
        %v639 = vsel %vm637, %v570, 0
        %641 = vmatprep.subr.bf16.mxu0 0
        %642 = vmatpush1.bf16.msra.mxu0 %v639
        %643 = vmatprep.subr.bf16.mxu0 0
        %644 = vmatpush1.bf16.msra.mxu0 0
        %645 = vmatprep.subr.bf16.mxu0 0
        %646 = vmatpush1.bf16.msra.mxu0 0
        %647 = vmatprep.subr.bf16.mxu0 0
        %648 = vmatpush1.bf16.msra.mxu0 0
        %649 = vmatprep.subr.bf16.mxu0 0
        %650 = vmatpush1.bf16.msra.mxu0 0
        %651 = vmatprep.subr.bf16.mxu0 0
        %652 = vmatpush1.bf16.msra.mxu0 0
        %653 = vmatprep.subr.bf16.mxu0 0
        %654 = vmatpush1.bf16.msra.mxu0 0
        %655 = vmatprep.subr.bf16.mxu0 0
        %656 = vmatpush1.bf16.msra.mxu0 0
        %657 = vmatprep.subr.bf16.mxu0 0
        %658 = vmatpush1.bf16.msra.mxu0 0
        %659 = vmatprep.subr.bf16.mxu0 0
        %660 = vmatpush1.bf16.msra.mxu0 0
        %661 = vmatprep.subr.bf16.mxu0 0
        %662 = vmatpush1.bf16.msra.mxu0 0
        %663 = vmatprep.subr.bf16.mxu0 0
        %664 = vmatpush1.bf16.msra.mxu0 0
        %665 = vmatprep.subr.bf16.mxu0 0
        %666 = vmatpush1.bf16.msra.mxu0 0
        %667 = vmatprep.subr.bf16.mxu0 0
        %668 = vmatpush1.bf16.msra.mxu0 0
        %669 = vmatprep.subr.bf16.mxu0 0
        %670 = vmatpush1.bf16.msra.mxu0 0
        %671 = vmatprep.subr.bf16.mxu0 0
        %672 = vmatpush1.bf16.msra.mxu0 0
        %673 = vmatprep.mubr.bf16.mxu0 0
        %674 = vmatmul.mubr.bf16.gmra.mrb[0].mxu0 %v635
        %v675 = vpop.f32.mrb[0].mxu0
        %v676 = vadd.f32 0.0, %v675
        %v677 = vpop.f32.mrb[0].mxu0
        %v678 = vpop.f32.mrb[0].mxu0
        %v679 = vpop.f32.mrb[0].mxu0
        %680 = vdwg.mxu0
        %681 = vst.msk [vmem:[#allocation2] sm:$0xff] %vm571, %v676
        %683 = vrot.lane.b32.xlu0 %v568, 120
        %v684 = vpop.permute.xlu0 %683
        %686 = vrot.lane.b32.xlu0 %v569, 120
        %v687 = vpop.permute.xlu0 %686
        %v689 = vsel %vm571, %v684, 0
        %v692 = vsel %vm571, %v687, 0
        %694 = vmatprep.subr.bf16.mxu0 0
        %695 = vmatpush1.bf16.xpose.msra.mxu0 %v692
        %696 = vmatprep.subr.bf16.mxu0 0
        %697 = vmatpush1.bf16.xpose.msra.mxu0 0
        %698 = vmatprep.subr.bf16.mxu0 0
        %699 = vmatpush1.bf16.xpose.msra.mxu0 0
        %700 = vmatprep.subr.bf16.mxu0 0
        %701 = vmatpush1.bf16.xpose.msra.mxu0 0
        %702 = vmatprep.subr.bf16.mxu0 0
        %703 = vmatpush1.bf16.xpose.msra.mxu0 0
        %704 = vmatprep.subr.bf16.mxu0 0
        %705 = vmatpush1.bf16.xpose.msra.mxu0 0
        %706 = vmatprep.subr.bf16.mxu0 0
        %707 = vmatpush1.bf16.xpose.msra.mxu0 0
        %708 = vmatprep.subr.bf16.mxu0 0
        %709 = vmatpush1.bf16.xpose.msra.mxu0 0
        %710 = vmatprep.subr.bf16.mxu0 0
        %711 = vmatpush1.bf16.xpose.msra.mxu0 0
        %712 = vmatprep.subr.bf16.mxu0 0
        %713 = vmatpush1.bf16.xpose.msra.mxu0 0
        %714 = vmatprep.subr.bf16.mxu0 0
        %715 = vmatpush1.bf16.xpose.msra.mxu0 0
        %716 = vmatprep.subr.bf16.mxu0 0
        %717 = vmatpush1.bf16.xpose.msra.mxu0 0
        %718 = vmatprep.subr.bf16.mxu0 0
        %719 = vmatpush1.bf16.xpose.msra.mxu0 0
        %720 = vmatprep.subr.bf16.mxu0 0
        %721 = vmatpush1.bf16.xpose.msra.mxu0 0
        %722 = vmatprep.subr.bf16.mxu0 0
        %723 = vmatpush1.bf16.xpose.msra.mxu0 0
        %724 = vmatprep.subr.bf16.mxu0 0
        %725 = vmatpush1.bf16.xpose.msra.mxu0 0
        %726 = vmatprep.mubr.bf16.mxu0 0
        %727 = vmatmul.mubr.bf16.gmra.mrb[0].mxu0 %v689
        %v728 = vpop.f32.mrb[0].mxu0
        %v729 = vadd.f32 0.0, %v728
        %v730 = vpop.f32.mrb[0].mxu0
        %v731 = vpop.f32.mrb[0].mxu0
        %v732 = vpop.f32.mrb[0].mxu0
        %733 = vdwg.mxu0
        %v734 = vmul.f32 %v729, 0.35355338
        %v735 = vsel %vm620, %v734, -1e+30
        %v736 = vsel %vm571, %v735, -inf
        %737 = vmax.xlane.f32.xlu0 %v736
        %v738 = vpop.xlane.xlu0 %737
        %v739 = vsub.f32 %v735, %v738
        %v740 = vmul.f32 %v739, 1.442695
        %v741 = vpow.pop %v740
        %v742 = vsel %vm571, %v741, 0.0
        %743 = vadd.xlane.f32.xlu0 %v742
        %v744 = vpop.xlane.xlu0 %743
        %v745 = vrcp.pop %v744
        %v746 = vmul.f32 %v741, %v745
        %v747 = vpack.c.bf16 %v746, %v746
        %749 = vrot.lane.b32.xlu0 %v570, 120
        %v750 = vpop.permute.xlu0 %749
        %v752 = vsel %vm571, %v747, 0
        %v755 = vsel %vm637, %v750, 0
        %757 = vmatprep.subr.bf16.mxu0 0
        %758 = vmatpush1.bf16.msra.mxu0 %v755
        %759 = vmatprep.subr.bf16.mxu0 0
        %760 = vmatpush1.bf16.msra.mxu0 0
        %761 = vmatprep.subr.bf16.mxu0 0
        %762 = vmatpush1.bf16.msra.mxu0 0
        %763 = vmatprep.subr.bf16.mxu0 0
        %764 = vmatpush1.bf16.msra.mxu0 0
        %765 = vmatprep.subr.bf16.mxu0 0
        %766 = vmatpush1.bf16.msra.mxu0 0
        %767 = vmatprep.subr.bf16.mxu0 0
        %768 = vmatpush1.bf16.msra.mxu0 0
        %769 = vmatprep.subr.bf16.mxu0 0
        %770 = vmatpush1.bf16.msra.mxu0 0
        %771 = vmatprep.subr.bf16.mxu0 0
        %772 = vmatpush1.bf16.msra.mxu0 0
        %773 = vmatprep.subr.bf16.mxu0 0
        %774 = vmatpush1.bf16.msra.mxu0 0
        %775 = vmatprep.subr.bf16.mxu0 0
        %776 = vmatpush1.bf16.msra.mxu0 0
        %777 = vmatprep.subr.bf16.mxu0 0
        %778 = vmatpush1.bf16.msra.mxu0 0
        %779 = vmatprep.subr.bf16.mxu0 0
        %780 = vmatpush1.bf16.msra.mxu0 0
        %781 = vmatprep.subr.bf16.mxu0 0
        %782 = vmatpush1.bf16.msra.mxu0 0
        %783 = vmatprep.subr.bf16.mxu0 0
        %784 = vmatpush1.bf16.msra.mxu0 0
        %785 = vmatprep.subr.bf16.mxu0 0
        %786 = vmatpush1.bf16.msra.mxu0 0
        %787 = vmatprep.subr.bf16.mxu0 0
        %788 = vmatpush1.bf16.msra.mxu0 0
        %789 = vmatprep.mubr.bf16.mxu0 0
        %790 = vmatmul.mubr.bf16.gmra.mrb[0].mxu0 %v752
        %v791 = vpop.f32.mrb[0].mxu0
        %v792 = vadd.f32 0.0, %v791
        %v793 = vpop.f32.mrb[0].mxu0
        %v794 = vpop.f32.mrb[0].mxu0
        %v795 = vpop.f32.mrb[0].mxu0
        %796 = vdwg.mxu0
        %798 = vrot.lane.b32.xlu0 %v792, 8
        %v799 = vpop.permute.xlu0 %798
        %vm801 = vcmask 130112
        %802 = vst.msk [vmem:[#allocation2] sm:$0xff] %vm801, %v799
        %803 = vrot.lane.b32.xlu0 %v568, 112
        %v804 = vpop.permute.xlu0 %803
        %805 = vrot.lane.b32.xlu0 %v569, 112
        %v806 = vpop.permute.xlu0 %805
        %v808 = vsel %vm571, %v804, 0
        %v811 = vsel %vm571, %v806, 0
        %813 = vmatprep.subr.bf16.mxu0 0
        %814 = vmatpush1.bf16.xpose.msra.mxu0 %v811
        %815 = vmatprep.subr.bf16.mxu0 0
        %816 = vmatpush1.bf16.xpose.msra.mxu0 0
        %817 = vmatprep.subr.bf16.mxu0 0
        %818 = vmatpush1.bf16.xpose.msra.mxu0 0
        %819 = vmatprep.subr.bf16.mxu0 0
        %820 = vmatpush1.bf16.xpose.msra.mxu0 0
        %821 = vmatprep.subr.bf16.mxu0 0
        %822 = vmatpush1.bf16.xpose.msra.mxu0 0
        %823 = vmatprep.subr.bf16.mxu0 0
        %824 = vmatpush1.bf16.xpose.msra.mxu0 0
        %825 = vmatprep.subr.bf16.mxu0 0
        %826 = vmatpush1.bf16.xpose.msra.mxu0 0
        %827 = vmatprep.subr.bf16.mxu0 0
        %828 = vmatpush1.bf16.xpose.msra.mxu0 0
        %829 = vmatprep.subr.bf16.mxu0 0
        %830 = vmatpush1.bf16.xpose.msra.mxu0 0
        %831 = vmatprep.subr.bf16.mxu0 0
        %832 = vmatpush1.bf16.xpose.msra.mxu0 0
        %833 = vmatprep.subr.bf16.mxu0 0
        %834 = vmatpush1.bf16.xpose.msra.mxu0 0
        %835 = vmatprep.subr.bf16.mxu0 0
        %836 = vmatpush1.bf16.xpose.msra.mxu0 0
        %837 = vmatprep.subr.bf16.mxu0 0
        %838 = vmatpush1.bf16.xpose.msra.mxu0 0
        %839 = vmatprep.subr.bf16.mxu0 0
        %840 = vmatpush1.bf16.xpose.msra.mxu0 0
        %841 = vmatprep.subr.bf16.mxu0 0
        %842 = vmatpush1.bf16.xpose.msra.mxu0 0
        %843 = vmatprep.subr.bf16.mxu0 0
        %844 = vmatpush1.bf16.xpose.msra.mxu0 0
        %845 = vmatprep.mubr.bf16.mxu0 0
        %846 = vmatmul.mubr.bf16.gmra.mrb[0].mxu0 %v808
        %v847 = vpop.f32.mrb[0].mxu0
        %v848 = vadd.f32 0.0, %v847
        %v849 = vpop.f32.mrb[0].mxu0
        %v850 = vpop.f32.mrb[0].mxu0
        %v851 = vpop.f32.mrb[0].mxu0
        %852 = vdwg.mxu0
        %v853 = vmul.f32 %v848, 0.35355338
        %v854 = vsel %vm620, %v853, -1e+30
        %v855 = vsel %vm571, %v854, -inf
        %856 = vmax.xlane.f32.xlu0 %v855
        %v857 = vpop.xlane.xlu0 %856
        %v858 = vsub.f32 %v854, %v857
        %v859 = vmul.f32 %v858, 1.442695
        %v860 = vpow.pop %v859
        %v861 = vsel %vm571, %v860, 0.0
        %862 = vadd.xlane.f32.xlu0 %v861
        %v863 = vpop.xlane.xlu0 %862
        %v864 = vrcp.pop %v863
        %v865 = vmul.f32 %v860, %v864
        %v866 = vpack.c.bf16 %v865, %v865
        %867 = vrot.lane.b32.xlu0 %v570, 112
        %v868 = vpop.permute.xlu0 %867
        %v870 = vsel %vm571, %v866, 0
        %v873 = vsel %vm637, %v868, 0
        %875 = vmatprep.subr.bf16.mxu0 0
        %876 = vmatpush1.bf16.msra.mxu0 %v873
        %877 = vmatprep.subr.bf16.mxu0 0
        %878 = vmatpush1.bf16.msra.mxu0 0
        %879 = vmatprep.subr.bf16.mxu0 0
        %880 = vmatpush1.bf16.msra.mxu0 0
        %881 = vmatprep.subr.bf16.mxu0 0
        %882 = vmatpush1.bf16.msra.mxu0 0
        %883 = vmatprep.subr.bf16.mxu0 0
        %884 = vmatpush1.bf16.msra.mxu0 0
        %885 = vmatprep.subr.bf16.mxu0 0
        %886 = vmatpush1.bf16.msra.mxu0 0
        %887 = vmatprep.subr.bf16.mxu0 0
        %888 = vmatpush1.bf16.msra.mxu0 0
        %889 = vmatprep.subr.bf16.mxu0 0
        %890 = vmatpush1.bf16.msra.mxu0 0
        %891 = vmatprep.subr.bf16.mxu0 0
        %892 = vmatpush1.bf16.msra.mxu0 0
        %893 = vmatprep.subr.bf16.mxu0 0
        %894 = vmatpush1.bf16.msra.mxu0 0
        %895 = vmatprep.subr.bf16.mxu0 0
        %896 = vmatpush1.bf16.msra.mxu0 0
        %897 = vmatprep.subr.bf16.mxu0 0
        %898 = vmatpush1.bf16.msra.mxu0 0
        %899 = vmatprep.subr.bf16.mxu0 0
        %900 = vmatpush1.bf16.msra.mxu0 0
        %901 = vmatprep.subr.bf16.mxu0 0
        %902 = vmatpush1.bf16.msra.mxu0 0
        %903 = vmatprep.subr.bf16.mxu0 0
        %904 = vmatpush1.bf16.msra.mxu0 0
        %905 = vmatprep.subr.bf16.mxu0 0
        %906 = vmatpush1.bf16.msra.mxu0 0
        %907 = vmatprep.mubr.bf16.mxu0 0
        %908 = vmatmul.mubr.bf16.gmra.mrb[0].mxu0 %v870
        %v909 = vpop.f32.mrb[0].mxu0
        %v910 = vadd.f32 0.0, %v909
        %v911 = vpop.f32.mrb[0].mxu0
        %v912 = vpop.f32.mrb[0].mxu0
        %v913 = vpop.f32.mrb[0].mxu0
        %914 = vdwg.mxu0
        %916 = vrot.lane.b32.xlu0 %v910, 16
        %v917 = vpop.permute.xlu0 %916
        %vm919 = vcmask 195712
        %920 = vst.msk [vmem:[#allocation2] sm:$0xff] %vm919, %v917
        %921 = vrot.lane.b32.xlu0 %v568, 104
        %v922 = vpop.permute.xlu0 %921
        %923 = vrot.lane.b32.xlu0 %v569, 104
        %v924 = vpop.permute.xlu0 %923
        %v926 = vsel %vm571, %v922, 0
        %v929 = vsel %vm571, %v924, 0
        %931 = vmatprep.subr.bf16.mxu0 0
        %932 = vmatpush1.bf16.xpose.msra.mxu0 %v929
        %933 = vmatprep.subr.bf16.mxu0 0
        %934 = vmatpush1.bf16.xpose.msra.mxu0 0
        %935 = vmatprep.subr.bf16.mxu0 0
        %936 = vmatpush1.bf16.xpose.msra.mxu0 0
        %937 = vmatprep.subr.bf16.mxu0 0
        %938 = vmatpush1.bf16.xpose.msra.mxu0 0
        %939 = vmatprep.subr.bf16.mxu0 0
        %940 = vmatpush1.bf16.xpose.msra.mxu0 0
        %941 = vmatprep.subr.bf16.mxu0 0
        %942 = vmatpush1.bf16.xpose.msra.mxu0 0
        %943 = vmatprep.subr.bf16.mxu0 0
        %944 = vmatpush1.bf16.xpose.msra.mxu0 0
        %945 = vmatprep.subr.bf16.mxu0 0
        %946 = vmatpush1.bf16.xpose.msra.mxu0 0
        %947 = vmatprep.subr.bf16.mxu0 0
        %948 = vmatpush1.bf16.xpose.msra.mxu0 0
        %949 = vmatprep.subr.bf16.mxu0 0
        %950 = vmatpush1.bf16.xpose.msra.mxu0 0
        %951 = vmatprep.subr.bf16.mxu0 0
        %952 = vmatpush1.bf16.xpose.msra.mxu0 0
        %953 = vmatprep.subr.bf16.mxu0 0
        %954 = vmatpush1.bf16.xpose.msra.mxu0 0
        %955 = vmatprep.subr.bf16.mxu0 0
        %956 = vmatpush1.bf16.xpose.msra.mxu0 0
        %957 = vmatprep.subr.bf16.mxu0 0
        %958 = vmatpush1.bf16.xpose.msra.mxu0 0
        %959 = vmatprep.subr.bf16.mxu0 0
        %960 = vmatpush1.bf16.xpose.msra.mxu0 0
        %961 = vmatprep.subr.bf16.mxu0 0
        %962 = vmatpush1.bf16.xpose.msra.mxu0 0
        %963 = vmatprep.mubr.bf16.mxu0 0
        %964 = vmatmul.mubr.bf16.gmra.mrb[0].mxu0 %v926
        %v965 = vpop.f32.mrb[0].mxu0
        %v966 = vadd.f32 0.0, %v965
        %v967 = vpop.f32.mrb[0].mxu0
        %v968 = vpop.f32.mrb[0].mxu0
        %v969 = vpop.f32.mrb[0].mxu0
        %970 = vdwg.mxu0
        %v971 = vmul.f32 %v966, 0.35355338
        %v972 = vsel %vm620, %v971, -1e+30
        %v973 = vsel %vm571, %v972, -inf
        %974 = vmax.xlane.f32.xlu0 %v973
        %v975 = vpop.xlane.xlu0 %974
        %v976 = vsub.f32 %v972, %v975
        %v977 = vmul.f32 %v976, 1.442695
        %v978 = vpow.pop %v977
        %v979 = vsel %vm571, %v978, 0.0
        %980 = vadd.xlane.f32.xlu0 %v979
        %v981 = vpop.xlane.xlu0 %980
        %v982 = vrcp.pop %v981
        %v983 = vmul.f32 %v978, %v982
        %v984 = vpack.c.bf16 %v983, %v983
        %985 = vrot.lane.b32.xlu0 %v570, 104
        %v986 = vpop.permute.xlu0 %985
        %v988 = vsel %vm571, %v984, 0
        %v991 = vsel %vm637, %v986, 0
        %993 = vmatprep.subr.bf16.mxu0 0
        %994 = vmatpush1.bf16.msra.mxu0 %v991
        %995 = vmatprep.subr.bf16.mxu0 0
        %996 = vmatpush1.bf16.msra.mxu0 0
        %997 = vmatprep.subr.bf16.mxu0 0
        %998 = vmatpush1.bf16.msra.mxu0 0
        %999 = vmatprep.subr.bf16.mxu0 0
        %1000 = vmatpush1.bf16.msra.mxu0 0
        %1001 = vmatprep.subr.bf16.mxu0 0
        %1002 = vmatpush1.bf16.msra.mxu0 0
        %1003 = vmatprep.subr.bf16.mxu0 0
        %1004 = vmatpush1.bf16.msra.mxu0 0
        %1005 = vmatprep.subr.bf16.mxu0 0
        %1006 = vmatpush1.bf16.msra.mxu0 0
        %1007 = vmatprep.subr.bf16.mxu0 0
        %1008 = vmatpush1.bf16.msra.mxu0 0
        %1009 = vmatprep.subr.bf16.mxu0 0
        %1010 = vmatpush1.bf16.msra.mxu0 0
        %1011 = vmatprep.subr.bf16.mxu0 0
        %1012 = vmatpush1.bf16.msra.mxu0 0
        %1013 = vmatprep.subr.bf16.mxu0 0
        %1014 = vmatpush1.bf16.msra.mxu0 0
        %1015 = vmatprep.subr.bf16.mxu0 0
        %1016 = vmatpush1.bf16.msra.mxu0 0
        %1017 = vmatprep.subr.bf16.mxu0 0
        %1018 = vmatpush1.bf16.msra.mxu0 0
        %1019 = vmatprep.subr.bf16.mxu0 0
        %1020 = vmatpush1.bf16.msra.mxu0 0
        %1021 = vmatprep.subr.bf16.mxu0 0
        %1022 = vmatpush1.bf16.msra.mxu0 0
        %1023 = vmatprep.subr.bf16.mxu0 0
        %1024 = vmatpush1.bf16.msra.mxu0 0
        %1025 = vmatprep.mubr.bf16.mxu0 0
        %1026 = vmatmul.mubr.bf16.gmra.mrb[0].mxu0 %v988
        %v1027 = vpop.f32.mrb[0].mxu0
        %v1028 = vadd.f32 0.0, %v1027
        %v1029 = vpop.f32.mrb[0].mxu0
        %v1030 = vpop.f32.mrb[0].mxu0
        %v1031 = vpop.f32.mrb[0].mxu0
        %1032 = vdwg.mxu0
        %1034 = vrot.lane.b32.xlu0 %v1028, 24
        %v1035 = vpop.permute.xlu0 %1034
        %vm1037 = vcmask 261312
        %1038 = vst.msk [vmem:[#allocation2] sm:$0xff] %vm1037, %v1035
        %v1039 = vld [vmem:[#allocation2] sm:$0xff]
        %v1040 = vpack.c.bf16 %v1039, %v1039
        %v1041 = vld [vmem:[%s6] sm:$0xf]
        %v1042 = vld [vmem:[%s6 + $0x4] sm:$0xf]
        %v1043 = vld [vmem:[%s6 + $0x8] sm:$0xf]
        %v1044 = vld [vmem:[%s6 + $0xc] sm:$0xf]
        %v1045 = vld [vmem:[%s7] sm:$0x1]
        %v1047 = vlaneseq
        %v1048 = vshrl.u32 %v1047, 7
        %v1049 = vsub.s32 0, %v1048
        %v1050 = vrot.slane %v1045, %v1049
        %v1056 = vunpack.c.l.b16 %v1041
        %v1057 = vunpack.c.l.b16 %v1042
        %v1058 = vunpack.c.l.b16 %v1043
        %v1059 = vunpack.c.l.b16 %v1044
        %v1060 = vpack.c.b16 %v1057, %v1056
        %v1061 = vpack.c.b16 %v1059, %v1058
        %v1065 = vsel %vm411, %v1040, 0
        %1067 = vmatprep.subr.bf16.mxu0 0
        %1068 = vmatpush1.bf16.msra.mxu0 %v1060
        %1069 = vmatprep.subr.bf16.mxu0 0
        %1070 = vmatpush1.bf16.msra.mxu0 %v1061
        %1071 = vmatprep.subr.bf16.mxu0 0
        %1072 = vmatpush1.bf16.msra.mxu0 0
        %1073 = vmatprep.subr.bf16.mxu0 0
        %1074 = vmatpush1.bf16.msra.mxu0 0
        %1075 = vmatprep.subr.bf16.mxu0 0
        %1076 = vmatpush1.bf16.msra.mxu0 0
        %1077 = vmatprep.subr.bf16.mxu0 0
        %1078 = vmatpush1.bf16.msra.mxu0 0
        %1079 = vmatprep.subr.bf16.mxu0 0
        %1080 = vmatpush1.bf16.msra.mxu0 0
        %1081 = vmatprep.subr.bf16.mxu0 0
        %1082 = vmatpush1.bf16.msra.mxu0 0
        %1083 = vmatprep.subr.bf16.mxu0 0
        %1084 = vmatpush1.bf16.msra.mxu0 0
        %1085 = vmatprep.subr.bf16.mxu0 0
        %1086 = vmatpush1.bf16.msra.mxu0 0
        %1087 = vmatprep.subr.bf16.mxu0 0
        %1088 = vmatpush1.bf16.msra.mxu0 0
        %1089 = vmatprep.subr.bf16.mxu0 0
        %1090 = vmatpush1.bf16.msra.mxu0 0
        %1091 = vmatprep.subr.bf16.mxu0 0
        %1092 = vmatpush1.bf16.msra.mxu0 0
        %1093 = vmatprep.subr.bf16.mxu0 0
        %1094 = vmatpush1.bf16.msra.mxu0 0
        %1095 = vmatprep.subr.bf16.mxu0 0
        %1096 = vmatpush1.bf16.msra.mxu0 0
        %1097 = vmatprep.subr.bf16.mxu0 0
        %1098 = vmatpush1.bf16.msra.mxu0 0
        %1099 = vmatprep.mubr.bf16.mxu0 0
        %1100 = vmatmul.mubr.bf16.gmra.mrb[0].mxu0 %v1065
        %v1101 = vpop.f32.mrb[0].mxu0
        %v1102 = vadd.f32 %v1050, %v1101
        %v1103 = vpop.f32.mrb[0].mxu0
        %v1104 = vpop.f32.mrb[0].mxu0
        %v1105 = vpop.f32.mrb[0].mxu0
        %1106 = vdwg.mxu0
        %1107 = vst.msk [vmem:[%s384] sm:$0xff] %vm411, %v1102
        %s1108 = sand.u32 %s203, 1
        %s1109 = scalar_lea.sflag [#allocation7], %s1108
        %s1110 = sand.u32 %s203, 1
        %s1111 = smul.addr %s1110, 8
        %s1112 = scalar_lea.vmem [#allocation13], %s1111
        // Predicated region
        $region65: #{tpu_custom_call.1} parent=47 // pred_check
          %p1113 = pneg %p213
        $region66: #{tpu_custom_call.1} parent=47 // pred_check_branch
          %1115 = sbr.rel (%p1113) target = $region68
        $region67: #{tpu_custom_call.1} parent=47 // pred_region
          %s1117 = ssub.s32 128, 128
          %1118 = vsyncadd %s1109, %s1117
          %s1119 = smul.addr %s33, 128
          %s1120 = scalar_lea.hbm %s8, %s1119
          %s1122 = sshll.u32 %s1112, 4
          %s1123 = int_to_ptr.vmem [resolvable:$true] %s1122
          %1125 = dma.vmem_to_hbm [thread:$0]  %s1123, 128, %s1120, %s1109
        $region68: #{tpu_custom_call.1} parent=47 // pred_fallthru
          _
      $region48: #{tpu_custom_call.1} parent=5 // pred_fallthru
        _
      %p1126 = scmp.le.s32.totalorder 2, %s28
      // Predicated region
      $region69: #{tpu_custom_call.1} parent=5 // pred_check
        %p1127 = pneg %p1126
      $region70: #{tpu_custom_call.1} parent=5 // pred_check_branch
        %1129 = sbr.rel (%p1127) target = $region72
      $region71: #{tpu_custom_call.1} parent=5 // pred_region
        %s1130 = ssub.s32 %s28, 2
        // Predicated region
        $region73: #{tpu_custom_call.1} parent=71 // pred_check
          %p1131 = pneg %p219
        $region74: #{tpu_custom_call.1} parent=71 // pred_check_branch
          %1133 = sbr.rel (%p1131) target = $region76
        $region75: #{tpu_custom_call.1} parent=71 // pred_region
          %s1134 = sand.u32 %s204, 1
          %s1135 = scalar_lea.sflag [#allocation7], %s1134
          %s1136 = sand.u32 %s204, 1
          %s1137 = smul.addr %s1136, 8
          %s1138 = scalar_lea.vmem [#allocation13], %s1137
          %1139 = dma.done %s1135, 128
        $region76: #{tpu_custom_call.1} parent=71 // pred_fallthru
          _
      $region72: #{tpu_custom_call.1} parent=5 // pred_fallthru
        _
    $region6: #{tpu_custom_call.1} parent=1 // loop_footer
      %s32 = sadd.s32 1, %s28
    $region7: #{tpu_custom_call.1} parent=1 // loop_footer_branch
      %27 = sbr.rel target = $region3
    $region8: #{tpu_custom_call.1} parent=1 // loop_exit
      _
    %1140 = vsyncpa [#allocation6], 1
    %s1141 = scalar_lea.sflag [#allocation6], 1
    %1142 = vsyncpa %s1141, 1
    %1143 = vsyncpa [#allocation9], 1
    %s1144 = scalar_lea.sflag [#allocation9], 1
    %1145 = vsyncpa %s1144, 1
    %1146 = vsyncpa [#allocation12], 1
    %1147 = vsyncpa [#allocation7], 1
    %s1148 = scalar_lea.sflag [#allocation7], 1
    %1149 = vsyncpa %s1148, 1

</llo_original>
